<compile_context>
chip_gen: v6e
topology: v6e:2x2x1
jax: 0.10.0
libtpu: 0.0.40
codegen_flags: <defaults>
</compile_context>

<pallas_src>
import math

import numpy as np
import jax
import jax.numpy as jnp
from jax import lax
from jax.experimental import pallas as pl
from jax.experimental.pallas import tpu as pltpu

# ----------------------------- configuration ------------------------------ #
T = 8              # number of decision steps in the trajectory
S_DIM = 16         # raw state dim fed to the (synthetic) state encoder
F_DIM = 32         # state_feature_dim
E = 128            # plm_embed_size
A = 6              # bitrate_levels
MAX_EP_LEN = 100
L = 6 * T          # stacked sequence length: (return, s1..s4, action) per step
EPS = 1e-5         # LayerNorm eps (torch default)
LANE = 128
assert L <= E      # `stacked_inputs[:, -E:, :]` is then a no-op

# xin lanes: [states 0:16 | return 16 | action 17 | zeros]
LANE_RET = S_DIM
LANE_ACT = S_DIM + 1

# ---- vec slab rows: (1,128) f32 parameter rows + causal-mask bias rows ---- #
R_ELN_G, R_ELN_B = 0, 1
R_LN1_G, R_LN1_B = 2, 3
R_BK, R_BV, R_BQ, R_BO = 4, 5, 6, 7
R_LN2_G, R_LN2_B = 8, 9
R_BM2 = 10
R_LNF_G, R_LNF_B = 11, 12
R_BHEAD = 13
R_MASK = 16        # rows 16..23: additive causal mask bias (T, L), lane-padded
N_VEC = 24

# ---- wide slab rows: multi-lane-block f32 biases --------------------------- #
W_BFUSED, W_BM1 = 0, 1
N_WIDE = 2         # shape (N_WIDE, 6E)

# ---- lane offsets in the bf16 weight slab (E, 9E): [K|V|Q*s|WO|M1|HEAD] ---- #
OFF_K = 0 * E      # K + V contiguous: one (E, 2E) slice for the fused KV dot
OFF_Q = 2 * E      # Q columns pre-scaled by 1/sqrt(E)
OFF_WO = 3 * E
OFF_M1 = 4 * E     # width 4E
OFF_HEAD = 8 * E   # width 128 (lane-padded action head)
W_LANES = 9 * E


def _ln(x, g, b):
    mu = jnp.mean(x, axis=-1, keepdims=True)
    xc = x - mu
    var = jnp.mean(xc * xc, axis=-1, keepdims=True)
    return xc * lax.rsqrt(var + EPS) * g + b


# ------------------------------- the kernel ------------------------------- #
def policy_kernel(ts_ref, xin_ref, emb_ref, vec_ref, wide_ref,
                  w_fused_ref, w_lanes_ref, w_m2_ref, out_ref):
    f32, bf16 = jnp.float32, jnp.bfloat16

    def vrow(r):                       # (1, E) parameter row, ref-sliced at use
        return vec_ref[r:r + 1, :]

    # --- time-embedding gather: T dynamic single-row loads, indices in SMEM ---
    te = jnp.concatenate(
        [emb_ref[pl.ds(ts_ref[i], 1), :] for i in range(T)], axis=0)   # (T, E)

    # --- ALL input-token embeddings with ONE MXU matmul -----------------------
    # xin lanes: [states | return | action | 0]; w_fused has the embed_return /
    # embed_action weights planted on rows LANE_RET / LANE_ACT of their column
    # blocks, so the Linear(1,E) embeddings ride the same (8,128)@(128,768) dot
    # as the fused state_encoder + embed_state1..4 path.
    xin_b = xin_ref[...].astype(bf16)                                   # (T, 128)
    s_all = jnp.dot(xin_b, w_fused_ref[...], preferred_element_type=f32)
    s_all = s_all + wide_ref[W_BFUSED:W_BFUSED + 1, :]                  # (T, 6E)

    # block order [ret | s1 | s2 | s3 | s4 | act]; each block + time embedding.
    cat = jnp.concatenate(
        [s_all[:, b * E:(b + 1) * E] + te for b in range(6)], axis=0)   # (L, E)

    # embed_ln
    x_all = _ln(cat, vrow(R_ELN_G), vrow(R_ELN_B))                      # (L, E)
    # residual stream for the 8 output rows (stacked position 6*i+4 == s4_i)
    x_q = x_all[4 * T:5 * T, :]                                         # (T, E)

    # --- synthetic PLM: single pre-LN causal transformer block + final LN -----
    h_all = _ln(x_all, vrow(R_LN1_G), vrow(R_LN1_B))                    # (L, E) f32
    kv = jnp.dot(h_all.astype(bf16), w_lanes_ref[:, OFF_K:OFF_K + 2 * E],
                 preferred_element_type=f32)                            # (L, 2E)
    k = kv[:, 0:E] + vrow(R_BK)
    v = kv[:, E:2 * E] + vrow(R_BV)
    # queries only for the 8 output rows; scale already folded into W_Q / b_Q
    q = jnp.dot(h_all[4 * T:5 * T, :].astype(bf16),
                w_lanes_ref[:, OFF_Q:OFF_Q + E],
                preferred_element_type=f32) + vrow(R_BQ)                # (T, E)

    scores = lax.dot_general(q.astype(bf16), k.astype(bf16),
                             (((1,), (1,)), ((), ())),
                             preferred_element_type=f32)                # (T, L)
    # precomputed additive causal mask (0 / -1e30), riding the vec slab
    scores = scores + vec_ref[R_MASK:R_MASK + T, :][:, :L]

    m = jnp.max(scores, axis=-1, keepdims=True)
    e = jnp.exp(scores - m)
    p = e * pl.reciprocal(jnp.sum(e, axis=-1, keepdims=True), approx=True)

    attn = jnp.dot(p.astype(bf16), v.astype(bf16),
                   preferred_element_type=f32)                          # (T, E)
    x1 = x_q + jnp.dot(attn.astype(bf16), w_lanes_ref[:, OFF_WO:OFF_WO + E],
                       preferred_element_type=f32) + vrow(R_BO)

    h2 = _ln(x1, vrow(R_LN2_G), vrow(R_LN2_B))
    u = jnp.dot(h2.astype(bf16), w_lanes_ref[:, OFF_M1:OFF_M1 + 4 * E],
                preferred_element_type=f32) + wide_ref[W_BM1:W_BM1 + 1, 0:4 * E]
    # tanh-approx GELU (GPT-2 style), in f32 on the VPU/EUP
    u = 0.5 * u * (1.0 + jnp.tanh(0.7978845608028654 * (u + 0.044715 * u * u * u)))
    x2 = x1 + jnp.dot(u.astype(bf16), w_m2_ref[...],
                      preferred_element_type=f32) + vrow(R_BM2)

    logits_used = _ln(x2, vrow(R_LNF_G), vrow(R_LNF_B))                 # (T, E)

    # residual=False path -> transformer output directly into the (padded) head
    out_ref[...] = jnp.dot(logits_used.astype(bf16),
                           w_lanes_ref[:, OFF_HEAD:OFF_HEAD + LANE],
                           preferred_element_type=f32) + vrow(R_BHEAD)


# --------------------------- params / glue (JAX) --------------------------- #
def init_params(key):
    ks = jax.random.split(key, 16)

    def nrm(k, shape, scale=0.02):
        return (scale * jax.random.normal(k, shape)).astype(jnp.float32)

    f32 = jnp.float32
    p = {}
    p['embed_timestep'] = nrm(ks[0], (MAX_EP_LEN + 1, E))
    p['w_ret'] = nrm(ks[1], (1, E));       p['b_ret'] = jnp.zeros((1, E), f32)
    p['w_act'] = nrm(ks[2], (1, E));       p['b_act'] = jnp.zeros((1, E), f32)
    p['w_enc'] = nrm(ks[3], (S_DIM, 4 * F_DIM))
    p['b_enc'] = jnp.zeros((1, 4 * F_DIM), f32)
    p['w_st'] = nrm(ks[4], (4, F_DIM, E)); p['b_st'] = jnp.zeros((4, E), f32)
    p['eln_g'] = jnp.ones((1, E), f32);    p['eln_b'] = jnp.zeros((1, E), f32)
    # synthetic PLM block
    p['ln1_g'] = jnp.ones((1, E), f32);    p['ln1_b'] = jnp.zeros((1, E), f32)
    p['w_qkv'] = nrm(ks[5], (E, 3 * E))    # column blocks [Q | K | V]
    p['b_qkv'] = jnp.zeros((1, 3 * E), f32)
    p['w_o'] = nrm(ks[6], (E, E));         p['b_o'] = jnp.zeros((1, E), f32)
    p['ln2_g'] = jnp.ones((1, E), f32);    p['ln2_b'] = jnp.zeros((1, E), f32)
    p['w_m1'] = nrm(ks[7], (E, 4 * E));    p['b_m1'] = jnp.zeros((1, 4 * E), f32)
    p['w_m2'] = nrm(ks[8], (4 * E, E));    p['b_m2'] = jnp.zeros((1, E), f32)
    p['lnf_g'] = jnp.ones((1, E), f32);    p['lnf_b'] = jnp.zeros((1, E), f32)
    # action head
    p['w_head'] = nrm(ks[9], (E, A));      p['b_head'] = jnp.zeros((1, A), f32)
    return p


def pack_params(p):
    """Host-side (one-time) algebraic folding + slab packing."""
    f32, bf16 = jnp.float32, jnp.bfloat16
    scale = 1.0 / math.sqrt(E)

    # ---- fused input-embedding matmul: (E, 6E) over the packed xin lanes ----
    # column blocks: [ret | s1 | s2 | s3 | s4 | act]
    w_fused = jnp.zeros((E, 6 * E), f32)
    b_fused = jnp.zeros((1, 6 * E), f32)
    w_fused = w_fused.at[LANE_RET, 0 * E:1 * E].set(p['w_ret'][0])
    b_fused = b_fused.at[:, 0 * E:1 * E].set(p['b_ret'])
    for kk in range(4):   # fold state_encoder into embed_state_{kk+1}
        we = p['w_enc'][:, kk * F_DIM:(kk + 1) * F_DIM]       # (S, F)
        be = p['b_enc'][:, kk * F_DIM:(kk + 1) * F_DIM]       # (1, F)
        ws = p['w_st'][kk]                                    # (F, E)
        w_fused = w_fused.at[:S_DIM, (kk + 1) * E:(kk + 2) * E].set(we @ ws)
        b_fused = b_fused.at[:, (kk + 1) * E:(kk + 2) * E].set(
            be @ ws + p['b_st'][kk:kk + 1, :])
    w_fused = w_fused.at[LANE_ACT, 5 * E:6 * E].set(p['w_act'][0])
    b_fused = b_fused.at[:, 5 * E:6 * E].set(p['b_act'])

    # ---- attention / MLP / head weight slab: [K | V | Q*scale | WO | M1 | HEAD]
    w_q = p['w_qkv'][:, 0:E] * scale
    w_k = p['w_qkv'][:, E:2 * E]
    w_v = p['w_qkv'][:, 2 * E:3 * E]
    w_head_pad = jnp.zeros((E, LANE), f32).at[:, :A].set(p['w_head'])
    w_lanes = jnp.concatenate([w_k, w_v, w_q, p['w_o'], p['w_m1'], w_head_pad],
                              axis=1)
    assert w_lanes.shape == (E, W_LANES)

    # ---- narrow (1,E) parameter rows + precomputed causal-mask bias ----------
    b_head_pad = jnp.zeros((1, LANE), f32).at[:, :A].set(p['b_head'])
    vec = jnp.zeros((N_VEC, LANE), f32)
    vec = vec.at[R_ELN_G].set(p['eln_g'][0]).at[R_ELN_B].set(p['eln_b'][0])
    vec = vec.at[R_LN1_G].set(p['ln1_g'][0]).at[R_LN1_B].set(p['ln1_b'][0])
    vec = vec.at[R_BK].set(p['b_qkv'][0, E:2 * E])
    vec = vec.at[R_BV].set(p['b_qkv'][0, 2 * E:3 * E])
    vec = vec.at[R_BQ].set(p['b_qkv'][0, 0:E] * scale)
    vec = vec.at[R_BO].set(p['b_o'][0])
    vec = vec.at[R_LN2_G].set(p['ln2_g'][0]).at[R_LN2_B].set(p['ln2_b'][0])
    vec = vec.at[R_BM2].set(p['b_m2'][0])
    vec = vec.at[R_LNF_G].set(p['lnf_g'][0]).at[R_LNF_B].set(p['lnf_b'][0])
    vec = vec.at[R_BHEAD].set(b_head_pad[0])

    # causal mask in block order: key (step t, slot j) sits at stacked position
    # 6*t + j; query i sits at stacked position 6*i + 4 (its s4 token).
    mask_np = np.zeros((T, L), np.float32)
    for i in range(T):
        for c in range(L):
            t, j = c % T, c // T
            if 6 * t + j > 6 * i + 4:
                mask_np[i, c] = -1e30
    vec = vec.at[R_MASK:R_MASK + T, :L].set(jnp.asarray(mask_np))

    # ---- wide f32 bias rows ----------------------------------------------------
    wide = jnp.zeros((N_WIDE, 6 * E), f32)
    wide = wide.at[W_BFUSED].set(b_fused[0])
    wide = wide.at[W_BM1, 0:4 * E].set(p['b_m1'][0])

    return {
        'emb': p['embed_timestep'],            # f32 (101, 128), gathered in-kernel
        'vec': vec,                            # f32 (24, 128)
        'wide': wide,                          # f32 (2, 768)
        'w_fused': w_fused.astype(bf16),       # bf16 (128, 768)
        'w_lanes': w_lanes.astype(bf16),       # bf16 (128, 1152)
        'w_m2': p['w_m2'].astype(bf16),        # bf16 (512, 128)
    }


@jax.jit
def offline_rl_policy_forward(packed, states, actions, returns, timesteps):
    """states: (1,T,S_DIM) f32, actions: (1,T,1) f32, returns: (1,T,1) f32,
    timesteps: (1,T) int32.  Returns action_pred: (1, T, bitrate_levels)."""
    assert actions.shape[0] == 1, 'batch size should be 1'
    f32 = jnp.float32
    # minimal host glue: one (8,128) lane-pack (states | return | action | 0)
    x_in = jnp.concatenate(
        [states[0].astype(f32), returns[0].astype(f32), actions[0].astype(f32),
         jnp.zeros((T, E - S_DIM - 2), f32)], axis=1)                  # (T, 128)
    ts = timesteps[0].astype(jnp.int32)                                # (T,)

    vmem = pl.BlockSpec(memory_space=pltpu.MemorySpace.VMEM)
    smem = pl.BlockSpec(memory_space=pltpu.MemorySpace.SMEM)
    out = pl.pallas_call(
        policy_kernel,
        out_shape=jax.ShapeDtypeStruct((T, LANE), jnp.float32),
        in_specs=[smem, vmem, vmem, vmem, vmem, vmem, vmem, vmem],
        out_specs=vmem,
    )(ts, x_in, packed['emb'], packed['vec'], packed['wide'],
      packed['w_fused'], packed['w_lanes'], packed['w_m2'])
    return out[:, :A][None]                                            # (1, T, A)


# --------------------------------- main ------------------------------------ #
if __name__ == "__main__":
    key = jax.random.PRNGKey(0)
    pkey, dkey = jax.random.split(key)
    params = init_params(pkey)
    packed = pack_params(params)

    k1, k2, k3 = jax.random.split(dkey, 3)
    states = jax.random.normal(k1, (1, T, S_DIM), dtype=jnp.float32)
    actions = jax.random.uniform(k2, (1, T, 1), dtype=jnp.float32)
    returns = jax.random.normal(k3, (1, T, 1), dtype=jnp.float32)
    timesteps = jnp.arange(T, dtype=jnp.int32)[None, :]

    action_pred = offline_rl_policy_forward(packed, states, actions, returns,
                                            timesteps)
    jax.block_until_ready(action_pred)
    assert action_pred.shape == (1, T, A)
    assert bool(jnp.all(jnp.isfinite(action_pred)))
    print("KERNEL_OK")
</pallas_src>

<mosaic_0001>
module attributes {stable_mosaic.version = 11 : i64} {
  func.func @policy_kernel(%arg0: memref<8xi32, #tpu.memory_space<smem>>, %arg1: memref<8x128xf32, #tpu.memory_space<vmem>>, %arg2: memref<101x128xf32, #tpu.memory_space<vmem>>, %arg3: memref<24x128xf32, #tpu.memory_space<vmem>>, %arg4: memref<2x768xf32, #tpu.memory_space<vmem>>, %arg5: memref<128x768xbf16, #tpu.memory_space<vmem>>, %arg6: memref<128x1152xbf16, #tpu.memory_space<vmem>>, %arg7: memref<512x128xbf16, #tpu.memory_space<vmem>>, %arg8: memref<8x128xf32, #tpu.memory_space<vmem>>) attributes {dimension_semantics = [], scalar_prefetch = 0 : i64, scratch_operands = 0 : i64, tpu.core_type = #tpu.core_type<tc>} {
    %c0 = arith.constant 0 : index
    %0 = memref.load %arg0[%c0] : memref<8xi32, #tpu.memory_space<smem>>
    %1 = arith.index_cast %0 : i32 to index
    %c0_0 = arith.constant 0 : index
    %2 = vector.load %arg2[%1, %c0_0] : memref<101x128xf32, #tpu.memory_space<vmem>>, vector<1x128xf32>
    %c1 = arith.constant 1 : index
    %3 = memref.load %arg0[%c1] : memref<8xi32, #tpu.memory_space<smem>>
    %4 = arith.index_cast %3 : i32 to index
    %c0_1 = arith.constant 0 : index
    %5 = vector.load %arg2[%4, %c0_1] : memref<101x128xf32, #tpu.memory_space<vmem>>, vector<1x128xf32>
    %c2 = arith.constant 2 : index
    %6 = memref.load %arg0[%c2] : memref<8xi32, #tpu.memory_space<smem>>
    %7 = arith.index_cast %6 : i32 to index
    %c0_2 = arith.constant 0 : index
    %8 = vector.load %arg2[%7, %c0_2] : memref<101x128xf32, #tpu.memory_space<vmem>>, vector<1x128xf32>
    %c3 = arith.constant 3 : index
    %9 = memref.load %arg0[%c3] : memref<8xi32, #tpu.memory_space<smem>>
    %10 = arith.index_cast %9 : i32 to index
    %c0_3 = arith.constant 0 : index
    %11 = vector.load %arg2[%10, %c0_3] : memref<101x128xf32, #tpu.memory_space<vmem>>, vector<1x128xf32>
    %c4 = arith.constant 4 : index
    %12 = memref.load %arg0[%c4] : memref<8xi32, #tpu.memory_space<smem>>
    %13 = arith.index_cast %12 : i32 to index
    %c0_4 = arith.constant 0 : index
    %14 = vector.load %arg2[%13, %c0_4] : memref<101x128xf32, #tpu.memory_space<vmem>>, vector<1x128xf32>
    %c5 = arith.constant 5 : index
    %15 = memref.load %arg0[%c5] : memref<8xi32, #tpu.memory_space<smem>>
    %16 = arith.index_cast %15 : i32 to index
    %c0_5 = arith.constant 0 : index
    %17 = vector.load %arg2[%16, %c0_5] : memref<101x128xf32, #tpu.memory_space<vmem>>, vector<1x128xf32>
    %c6 = arith.constant 6 : index
    %18 = memref.load %arg0[%c6] : memref<8xi32, #tpu.memory_space<smem>>
    %19 = arith.index_cast %18 : i32 to index
    %c0_6 = arith.constant 0 : index
    %20 = vector.load %arg2[%19, %c0_6] : memref<101x128xf32, #tpu.memory_space<vmem>>, vector<1x128xf32>
    %c7 = arith.constant 7 : index
    %21 = memref.load %arg0[%c7] : memref<8xi32, #tpu.memory_space<smem>>
    %22 = arith.index_cast %21 : i32 to index
    %c0_7 = arith.constant 0 : index
    %23 = vector.load %arg2[%22, %c0_7] : memref<101x128xf32, #tpu.memory_space<vmem>>, vector<1x128xf32>
    %24 = tpu.concatenate %2, %5, %8, %11, %14, %17, %20, %23 in 0 : vector<1x128xf32>, vector<1x128xf32>, vector<1x128xf32>, vector<1x128xf32>, vector<1x128xf32>, vector<1x128xf32>, vector<1x128xf32>, vector<1x128xf32> -> vector<8x128xf32>
    %c0_8 = arith.constant 0 : index
    %c0_9 = arith.constant 0 : index
    %25 = vector.load %arg1[%c0_8, %c0_9] : memref<8x128xf32, #tpu.memory_space<vmem>>, vector<8x128xf32>
    %26 = arith.truncf %25 : vector<8x128xf32> to vector<8x128xbf16>
    %c0_10 = arith.constant 0 : index
    %c0_11 = arith.constant 0 : index
    %27 = vector.load %arg5[%c0_10, %c0_11] : memref<128x768xbf16, #tpu.memory_space<vmem>>, vector<128x768xbf16>
    %cst = arith.constant dense<0.000000e+00> : vector<8x768xf32>
    %28 = tpu.matmul %26, %27, %cst {dimension_numbers = #tpu.dot_dimension_numbers<[1], [0], [0], [1], [0, 0, 1, 1], [], []>} : vector<8x128xbf16>, vector<128x768xbf16>, vector<8x768xf32> -> vector<8x768xf32>
    %c0_12 = arith.constant 0 : index
    %c0_13 = arith.constant 0 : index
    %29 = vector.load %arg4[%c0_12, %c0_13] : memref<2x768xf32, #tpu.memory_space<vmem>>, vector<1x768xf32>
    %30 = vector.broadcast %29 : vector<1x768xf32> to vector<8x768xf32>
    %31 = arith.addf %28, %30 : vector<8x768xf32>
    %32 = vector.extract_strided_slice %31 {offsets = [0, 0], sizes = [8, 128], strides = [1, 1]} : vector<8x768xf32> to vector<8x128xf32>
    %33 = arith.addf %32, %24 : vector<8x128xf32>
    %34 = vector.extract_strided_slice %31 {offsets = [0, 128], sizes = [8, 128], strides = [1, 1]} : vector<8x768xf32> to vector<8x128xf32>
    %35 = arith.addf %34, %24 : vector<8x128xf32>
    %36 = vector.extract_strided_slice %31 {offsets = [0, 256], sizes = [8, 128], strides = [1, 1]} : vector<8x768xf32> to vector<8x128xf32>
    %37 = arith.addf %36, %24 : vector<8x128xf32>
    %38 = vector.extract_strided_slice %31 {offsets = [0, 384], sizes = [8, 128], strides = [1, 1]} : vector<8x768xf32> to vector<8x128xf32>
    %39 = arith.addf %38, %24 : vector<8x128xf32>
    %40 = vector.extract_strided_slice %31 {offsets = [0, 512], sizes = [8, 128], strides = [1, 1]} : vector<8x768xf32> to vector<8x128xf32>
    %41 = arith.addf %40, %24 : vector<8x128xf32>
    %42 = vector.extract_strided_slice %31 {offsets = [0, 640], sizes = [8, 128], strides = [1, 1]} : vector<8x768xf32> to vector<8x128xf32>
    %43 = arith.addf %42, %24 : vector<8x128xf32>
    %44 = tpu.concatenate %33, %35, %37, %39, %41, %43 in 0 : vector<8x128xf32>, vector<8x128xf32>, vector<8x128xf32>, vector<8x128xf32>, vector<8x128xf32>, vector<8x128xf32> -> vector<48x128xf32>
    %c0_14 = arith.constant 0 : index
    %c0_15 = arith.constant 0 : index
    %45 = vector.load %arg3[%c0_14, %c0_15] : memref<24x128xf32, #tpu.memory_space<vmem>>, vector<1x128xf32>
    %c1_16 = arith.constant 1 : index
    %c0_17 = arith.constant 0 : index
    %46 = vector.load %arg3[%c1_16, %c0_17] : memref<24x128xf32, #tpu.memory_space<vmem>>, vector<1x128xf32>
    %cst_18 = arith.constant dense<0.000000e+00> : vector<48xf32>
    %47 = vector.multi_reduction <add>, %44, %cst_18 [1] : vector<48x128xf32> to vector<48xf32>
    %48 = vector.shape_cast %47 : vector<48xf32> to vector<48x1xf32>
    %cst_19 = arith.constant 1.280000e+02 : f32
    %49 = vector.broadcast %cst_19 : f32 to vector<48x1xf32>
    %50 = arith.divf %48, %49 : vector<48x1xf32>
    %51 = vector.broadcast %50 : vector<48x1xf32> to vector<48x128xf32>
    %52 = arith.subf %44, %51 : vector<48x128xf32>
    %53 = arith.mulf %52, %52 : vector<48x128xf32>
    %cst_20 = arith.constant dense<0.000000e+00> : vector<48xf32>
    %54 = vector.multi_reduction <add>, %53, %cst_20 [1] : vector<48x128xf32> to vector<48xf32>
    %55 = vector.shape_cast %54 : vector<48xf32> to vector<48x1xf32>
    %cst_21 = arith.constant 1.280000e+02 : f32
    %56 = vector.broadcast %cst_21 : f32 to vector<48x1xf32>
    %57 = arith.divf %55, %56 : vector<48x1xf32>
    %cst_22 = arith.constant 9.99999974E-6 : f32
    %58 = vector.broadcast %cst_22 : f32 to vector<48x1xf32>
    %59 = arith.addf %57, %58 : vector<48x1xf32>
    %60 = math.rsqrt %59 : vector<48x1xf32>
    %61 = vector.broadcast %60 : vector<48x1xf32> to vector<48x128xf32>
    %62 = arith.mulf %52, %61 : vector<48x128xf32>
    %63 = vector.broadcast %45 : vector<1x128xf32> to vector<48x128xf32>
    %64 = arith.mulf %62, %63 : vector<48x128xf32>
    %65 = vector.broadcast %46 : vector<1x128xf32> to vector<48x128xf32>
    %66 = arith.addf %64, %65 : vector<48x128xf32>
    %67 = vector.extract_strided_slice %66 {offsets = [32, 0], sizes = [8, 128], strides = [1, 1]} : vector<48x128xf32> to vector<8x128xf32>
    %c2_23 = arith.constant 2 : index
    %c0_24 = arith.constant 0 : index
    %68 = vector.load %arg3[%c2_23, %c0_24] : memref<24x128xf32, #tpu.memory_space<vmem>>, vector<1x128xf32>
    %c3_25 = arith.constant 3 : index
    %c0_26 = arith.constant 0 : index
    %69 = vector.load %arg3[%c3_25, %c0_26] : memref<24x128xf32, #tpu.memory_space<vmem>>, vector<1x128xf32>
    %cst_27 = arith.constant dense<0.000000e+00> : vector<48xf32>
    %70 = vector.multi_reduction <add>, %66, %cst_27 [1] : vector<48x128xf32> to vector<48xf32>
    %71 = vector.shape_cast %70 : vector<48xf32> to vector<48x1xf32>
    %cst_28 = arith.constant 1.280000e+02 : f32
    %72 = vector.broadcast %cst_28 : f32 to vector<48x1xf32>
    %73 = arith.divf %71, %72 : vector<48x1xf32>
    %74 = vector.broadcast %73 : vector<48x1xf32> to vector<48x128xf32>
    %75 = arith.subf %66, %74 : vector<48x128xf32>
    %76 = arith.mulf %75, %75 : vector<48x128xf32>
    %cst_29 = arith.constant dense<0.000000e+00> : vector<48xf32>
    %77 = vector.multi_reduction <add>, %76, %cst_29 [1] : vector<48x128xf32> to vector<48xf32>
    %78 = vector.shape_cast %77 : vector<48xf32> to vector<48x1xf32>
    %cst_30 = arith.constant 1.280000e+02 : f32
    %79 = vector.broadcast %cst_30 : f32 to vector<48x1xf32>
    %80 = arith.divf %78, %79 : vector<48x1xf32>
    %cst_31 = arith.constant 9.99999974E-6 : f32
    %81 = vector.broadcast %cst_31 : f32 to vector<48x1xf32>
    %82 = arith.addf %80, %81 : vector<48x1xf32>
    %83 = math.rsqrt %82 : vector<48x1xf32>
    %84 = vector.broadcast %83 : vector<48x1xf32> to vector<48x128xf32>
    %85 = arith.mulf %75, %84 : vector<48x128xf32>
    %86 = vector.broadcast %68 : vector<1x128xf32> to vector<48x128xf32>
    %87 = arith.mulf %85, %86 : vector<48x128xf32>
    %88 = vector.broadcast %69 : vector<1x128xf32> to vector<48x128xf32>
    %89 = arith.addf %87, %88 : vector<48x128xf32>
    %90 = arith.truncf %89 : vector<48x128xf32> to vector<48x128xbf16>
    %c0_32 = arith.constant 0 : index
    %c0_33 = arith.constant 0 : index
    %91 = vector.load %arg6[%c0_32, %c0_33] : memref<128x1152xbf16, #tpu.memory_space<vmem>>, vector<128x256xbf16>
    %cst_34 = arith.constant dense<0.000000e+00> : vector<48x256xf32>
    %92 = tpu.matmul %90, %91, %cst_34 {dimension_numbers = #tpu.dot_dimension_numbers<[1], [0], [0], [1], [0, 0, 1, 1], [], []>} : vector<48x128xbf16>, vector<128x256xbf16>, vector<48x256xf32> -> vector<48x256xf32>
    %93 = vector.extract_strided_slice %92 {offsets = [0, 0], sizes = [48, 128], strides = [1, 1]} : vector<48x256xf32> to vector<48x128xf32>
    %c4_35 = arith.constant 4 : index
    %c0_36 = arith.constant 0 : index
    %94 = vector.load %arg3[%c4_35, %c0_36] : memref<24x128xf32, #tpu.memory_space<vmem>>, vector<1x128xf32>
    %95 = vector.broadcast %94 : vector<1x128xf32> to vector<48x128xf32>
    %96 = arith.addf %93, %95 : vector<48x128xf32>
    %97 = vector.extract_strided_slice %92 {offsets = [0, 128], sizes = [48, 128], strides = [1, 1]} : vector<48x256xf32> to vector<48x128xf32>
    %c5_37 = arith.constant 5 : index
    %c0_38 = arith.constant 0 : index
    %98 = vector.load %arg3[%c5_37, %c0_38] : memref<24x128xf32, #tpu.memory_space<vmem>>, vector<1x128xf32>
    %99 = vector.broadcast %98 : vector<1x128xf32> to vector<48x128xf32>
    %100 = arith.addf %97, %99 : vector<48x128xf32>
    %101 = vector.extract_strided_slice %89 {offsets = [32, 0], sizes = [8, 128], strides = [1, 1]} : vector<48x128xf32> to vector<8x128xf32>
    %102 = arith.truncf %101 : vector<8x128xf32> to vector<8x128xbf16>
    %c0_39 = arith.constant 0 : index
    %c256 = arith.constant 256 : index
    %103 = vector.load %arg6[%c0_39, %c256] : memref<128x1152xbf16, #tpu.memory_space<vmem>>, vector<128x128xbf16>
    %cst_40 = arith.constant dense<0.000000e+00> : vector<8x128xf32>
    %104 = tpu.matmul %102, %103, %cst_40 {dimension_numbers = #tpu.dot_dimension_numbers<[1], [0], [0], [1], [0, 0, 1, 1], [], []>} : vector<8x128xbf16>, vector<128x128xbf16>, vector<8x128xf32> -> vector<8x128xf32>
    %c6_41 = arith.constant 6 : index
    %c0_42 = arith.constant 0 : index
    %105 = vector.load %arg3[%c6_41, %c0_42] : memref<24x128xf32, #tpu.memory_space<vmem>>, vector<1x128xf32>
    %106 = vector.broadcast %105 : vector<1x128xf32> to vector<8x128xf32>
    %107 = arith.addf %104, %106 : vector<8x128xf32>
    %108 = arith.truncf %107 : vector<8x128xf32> to vector<8x128xbf16>
    %109 = arith.truncf %96 : vector<48x128xf32> to vector<48x128xbf16>
    %cst_43 = arith.constant dense<0.000000e+00> : vector<8x48xf32>
    %110 = tpu.matmul %108, %109, %cst_43 {dimension_numbers = #tpu.dot_dimension_numbers<[1], [1], [0], [0], [0, 0, 1, 0], [], []>} : vector<8x128xbf16>, vector<48x128xbf16>, vector<8x48xf32> -> vector<8x48xf32>
    %c16 = arith.constant 16 : index
    %c0_44 = arith.constant 0 : index
    %111 = vector.load %arg3[%c16, %c0_44] : memref<24x128xf32, #tpu.memory_space<vmem>>, vector<8x128xf32>
    %112 = vector.extract_strided_slice %111 {offsets = [0, 0], sizes = [8, 48], strides = [1, 1]} : vector<8x128xf32> to vector<8x48xf32>
    %113 = arith.addf %110, %112 : vector<8x48xf32>
    %cst_45 = arith.constant dense<0xFF800000> : vector<8xf32>
    %114 = vector.multi_reduction <maximumf>, %113, %cst_45 [1] : vector<8x48xf32> to vector<8xf32>
    %115 = vector.shape_cast %114 : vector<8xf32> to vector<8x1xf32>
    %116 = vector.broadcast %115 : vector<8x1xf32> to vector<8x48xf32>
    %117 = arith.subf %113, %116 : vector<8x48xf32>
    %118 = math.exp %117 : vector<8x48xf32>
    %cst_46 = arith.constant dense<0.000000e+00> : vector<8xf32>
    %119 = vector.multi_reduction <add>, %118, %cst_46 [1] : vector<8x48xf32> to vector<8xf32>
    %120 = vector.shape_cast %119 : vector<8xf32> to vector<8x1xf32>
    %121 = tpu.reciprocal %120 {approx = true} : vector<8x1xf32> -> vector<8x1xf32>
    %122 = vector.broadcast %121 : vector<8x1xf32> to vector<8x48xf32>
    %123 = arith.mulf %118, %122 : vector<8x48xf32>
    %124 = arith.truncf %123 : vector<8x48xf32> to vector<8x48xbf16>
    %125 = arith.truncf %100 : vector<48x128xf32> to vector<48x128xbf16>
    %cst_47 = arith.constant dense<0.000000e+00> : vector<8x128xf32>
    %126 = tpu.matmul %124, %125, %cst_47 {dimension_numbers = #tpu.dot_dimension_numbers<[1], [0], [0], [1], [0, 0, 1, 1], [], []>} : vector<8x48xbf16>, vector<48x128xbf16>, vector<8x128xf32> -> vector<8x128xf32>
    %127 = arith.truncf %126 : vector<8x128xf32> to vector<8x128xbf16>
    %c0_48 = arith.constant 0 : index
    %c384 = arith.constant 384 : index
    %128 = vector.load %arg6[%c0_48, %c384] : memref<128x1152xbf16, #tpu.memory_space<vmem>>, vector<128x128xbf16>
    %cst_49 = arith.constant dense<0.000000e+00> : vector<8x128xf32>
    %129 = tpu.matmul %127, %128, %cst_49 {dimension_numbers = #tpu.dot_dimension_numbers<[1], [0], [0], [1], [0, 0, 1, 1], [], []>} : vector<8x128xbf16>, vector<128x128xbf16>, vector<8x128xf32> -> vector<8x128xf32>
    %130 = arith.addf %67, %129 : vector<8x128xf32>
    %c7_50 = arith.constant 7 : index
    %c0_51 = arith.constant 0 : index
    %131 = vector.load %arg3[%c7_50, %c0_51] : memref<24x128xf32, #tpu.memory_space<vmem>>, vector<1x128xf32>
    %132 = vector.broadcast %131 : vector<1x128xf32> to vector<8x128xf32>
    %133 = arith.addf %130, %132 : vector<8x128xf32>
    %c8 = arith.constant 8 : index
    %c0_52 = arith.constant 0 : index
    %134 = vector.load %arg3[%c8, %c0_52] : memref<24x128xf32, #tpu.memory_space<vmem>>, vector<1x128xf32>
    %c9 = arith.constant 9 : index
    %c0_53 = arith.constant 0 : index
    %135 = vector.load %arg3[%c9, %c0_53] : memref<24x128xf32, #tpu.memory_space<vmem>>, vector<1x128xf32>
    %cst_54 = arith.constant dense<0.000000e+00> : vector<8xf32>
    %136 = vector.multi_reduction <add>, %133, %cst_54 [1] : vector<8x128xf32> to vector<8xf32>
    %137 = vector.shape_cast %136 : vector<8xf32> to vector<8x1xf32>
    %cst_55 = arith.constant 1.280000e+02 : f32
    %138 = vector.broadcast %cst_55 : f32 to vector<8x1xf32>
    %139 = arith.divf %137, %138 : vector<8x1xf32>
    %140 = vector.broadcast %139 : vector<8x1xf32> to vector<8x128xf32>
    %141 = arith.subf %133, %140 : vector<8x128xf32>
    %142 = arith.mulf %141, %141 : vector<8x128xf32>
    %cst_56 = arith.constant dense<0.000000e+00> : vector<8xf32>
    %143 = vector.multi_reduction <add>, %142, %cst_56 [1] : vector<8x128xf32> to vector<8xf32>
    %144 = vector.shape_cast %143 : vector<8xf32> to vector<8x1xf32>
    %cst_57 = arith.constant 1.280000e+02 : f32
    %145 = vector.broadcast %cst_57 : f32 to vector<8x1xf32>
    %146 = arith.divf %144, %145 : vector<8x1xf32>
    %cst_58 = arith.constant 9.99999974E-6 : f32
    %147 = vector.broadcast %cst_58 : f32 to vector<8x1xf32>
    %148 = arith.addf %146, %147 : vector<8x1xf32>
    %149 = math.rsqrt %148 : vector<8x1xf32>
    %150 = vector.broadcast %149 : vector<8x1xf32> to vector<8x128xf32>
    %151 = arith.mulf %141, %150 : vector<8x128xf32>
    %152 = vector.broadcast %134 : vector<1x128xf32> to vector<8x128xf32>
    %153 = arith.mulf %151, %152 : vector<8x128xf32>
    %154 = vector.broadcast %135 : vector<1x128xf32> to vector<8x128xf32>
    %155 = arith.addf %153, %154 : vector<8x128xf32>
    %156 = arith.truncf %155 : vector<8x128xf32> to vector<8x128xbf16>
    %c0_59 = arith.constant 0 : index
    %c512 = arith.constant 512 : index
    %157 = vector.load %arg6[%c0_59, %c512] : memref<128x1152xbf16, #tpu.memory_space<vmem>>, vector<128x512xbf16>
    %cst_60 = arith.constant dense<0.000000e+00> : vector<8x512xf32>
    %158 = tpu.matmul %156, %157, %cst_60 {dimension_numbers = #tpu.dot_dimension_numbers<[1], [0], [0], [1], [0, 0, 1, 1], [], []>} : vector<8x128xbf16>, vector<128x512xbf16>, vector<8x512xf32> -> vector<8x512xf32>
    %c1_61 = arith.constant 1 : index
    %c0_62 = arith.constant 0 : index
    %159 = vector.load %arg4[%c1_61, %c0_62] : memref<2x768xf32, #tpu.memory_space<vmem>>, vector<1x512xf32>
    %160 = vector.broadcast %159 : vector<1x512xf32> to vector<8x512xf32>
    %161 = arith.addf %158, %160 : vector<8x512xf32>
    %cst_63 = arith.constant 5.000000e-01 : f32
    %162 = vector.broadcast %cst_63 : f32 to vector<8x512xf32>
    %163 = arith.mulf %162, %161 : vector<8x512xf32>
    %cst_64 = arith.constant 4.471500e-02 : f32
    %164 = vector.broadcast %cst_64 : f32 to vector<8x512xf32>
    %165 = arith.mulf %164, %161 : vector<8x512xf32>
    %166 = arith.mulf %165, %161 : vector<8x512xf32>
    %167 = arith.mulf %166, %161 : vector<8x512xf32>
    %168 = arith.addf %161, %167 : vector<8x512xf32>
    %cst_65 = arith.constant 0.797884583 : f32
    %169 = vector.broadcast %cst_65 : f32 to vector<8x512xf32>
    %170 = arith.mulf %169, %168 : vector<8x512xf32>
    %171 = math.tanh %170 : vector<8x512xf32>
    %cst_66 = arith.constant 1.000000e+00 : f32
    %172 = vector.broadcast %cst_66 : f32 to vector<8x512xf32>
    %173 = arith.addf %172, %171 : vector<8x512xf32>
    %174 = arith.mulf %163, %173 : vector<8x512xf32>
    %175 = arith.truncf %174 : vector<8x512xf32> to vector<8x512xbf16>
    %c0_67 = arith.constant 0 : index
    %c0_68 = arith.constant 0 : index
    %176 = vector.load %arg7[%c0_67, %c0_68] : memref<512x128xbf16, #tpu.memory_space<vmem>>, vector<512x128xbf16>
    %cst_69 = arith.constant dense<0.000000e+00> : vector<8x128xf32>
    %177 = tpu.matmul %175, %176, %cst_69 {dimension_numbers = #tpu.dot_dimension_numbers<[1], [0], [0], [1], [0, 0, 1, 1], [], []>} : vector<8x512xbf16>, vector<512x128xbf16>, vector<8x128xf32> -> vector<8x128xf32>
    %178 = arith.addf %133, %177 : vector<8x128xf32>
    %c10 = arith.constant 10 : index
    %c0_70 = arith.constant 0 : index
    %179 = vector.load %arg3[%c10, %c0_70] : memref<24x128xf32, #tpu.memory_space<vmem>>, vector<1x128xf32>
    %180 = vector.broadcast %179 : vector<1x128xf32> to vector<8x128xf32>
    %181 = arith.addf %178, %180 : vector<8x128xf32>
    %c11 = arith.constant 11 : index
    %c0_71 = arith.constant 0 : index
    %182 = vector.load %arg3[%c11, %c0_71] : memref<24x128xf32, #tpu.memory_space<vmem>>, vector<1x128xf32>
    %c12 = arith.constant 12 : index
    %c0_72 = arith.constant 0 : index
    %183 = vector.load %arg3[%c12, %c0_72] : memref<24x128xf32, #tpu.memory_space<vmem>>, vector<1x128xf32>
    %cst_73 = arith.constant dense<0.000000e+00> : vector<8xf32>
    %184 = vector.multi_reduction <add>, %181, %cst_73 [1] : vector<8x128xf32> to vector<8xf32>
    %185 = vector.shape_cast %184 : vector<8xf32> to vector<8x1xf32>
    %cst_74 = arith.constant 1.280000e+02 : f32
    %186 = vector.broadcast %cst_74 : f32 to vector<8x1xf32>
    %187 = arith.divf %185, %186 : vector<8x1xf32>
    %188 = vector.broadcast %187 : vector<8x1xf32> to vector<8x128xf32>
    %189 = arith.subf %181, %188 : vector<8x128xf32>
    %190 = arith.mulf %189, %189 : vector<8x128xf32>
    %cst_75 = arith.constant dense<0.000000e+00> : vector<8xf32>
    %191 = vector.multi_reduction <add>, %190, %cst_75 [1] : vector<8x128xf32> to vector<8xf32>
    %192 = vector.shape_cast %191 : vector<8xf32> to vector<8x1xf32>
    %cst_76 = arith.constant 1.280000e+02 : f32
    %193 = vector.broadcast %cst_76 : f32 to vector<8x1xf32>
    %194 = arith.divf %192, %193 : vector<8x1xf32>
    %cst_77 = arith.constant 9.99999974E-6 : f32
    %195 = vector.broadcast %cst_77 : f32 to vector<8x1xf32>
    %196 = arith.addf %194, %195 : vector<8x1xf32>
    %197 = math.rsqrt %196 : vector<8x1xf32>
    %198 = vector.broadcast %197 : vector<8x1xf32> to vector<8x128xf32>
    %199 = arith.mulf %189, %198 : vector<8x128xf32>
    %200 = vector.broadcast %182 : vector<1x128xf32> to vector<8x128xf32>
    %201 = arith.mulf %199, %200 : vector<8x128xf32>
    %202 = vector.broadcast %183 : vector<1x128xf32> to vector<8x128xf32>
    %203 = arith.addf %201, %202 : vector<8x128xf32>
    %204 = arith.truncf %203 : vector<8x128xf32> to vector<8x128xbf16>
    %c0_78 = arith.constant 0 : index
    %c1024 = arith.constant 1024 : index
    %205 = vector.load %arg6[%c0_78, %c1024] : memref<128x1152xbf16, #tpu.memory_space<vmem>>, vector<128x128xbf16>
    %cst_79 = arith.constant dense<0.000000e+00> : vector<8x128xf32>
    %206 = tpu.matmul %204, %205, %cst_79 {dimension_numbers = #tpu.dot_dimension_numbers<[1], [0], [0], [1], [0, 0, 1, 1], [], []>} : vector<8x128xbf16>, vector<128x128xbf16>, vector<8x128xf32> -> vector<8x128xf32>
    %c13 = arith.constant 13 : index
    %c0_80 = arith.constant 0 : index
    %207 = vector.load %arg3[%c13, %c0_80] : memref<24x128xf32, #tpu.memory_space<vmem>>, vector<1x128xf32>
    %208 = vector.broadcast %207 : vector<1x128xf32> to vector<8x128xf32>
    %209 = arith.addf %206, %208 : vector<8x128xf32>
    %c0_81 = arith.constant 0 : index
    %c0_82 = arith.constant 0 : index
    %210 = vector.load %arg8[%c0_81, %c0_82] : memref<8x128xf32, #tpu.memory_space<vmem>>, vector<8x128xf32>
    tpu.vector_store %arg8[%c0_81, %c0_82], %209 {strides = array<i32>} : memref<8x128xf32, #tpu.memory_space<vmem>>, vector<8x128xf32>,
    return
  }
}

</mosaic_0001>

<llo_original>
// kernel: offline_rl_policy_forward.1
$region0: #{offline_rl_policy_forward.1}
  #allocation0 [shape = 'u32[]', space=smem, size = 0x4, offset = 0x4, fixed_abs, tag = 'smem constant byte address 0x4 - core index']
  #allocation1 [shape = 'u32[144,128]{1,0:T(1,128)}', space=vmem, size = 0x12000, scoped, tag = 'internal scratch']
  %s0 = inlined_call_operand.vmem [shape: s32[8], index: 0, kind: input, shape index: {}]
  %s1 = inlined_call_operand.vmem [shape: f32[8,128], index: 1, kind: input, shape index: {}]
  %s2 = inlined_call_operand.hbm [shape: f32[101,128], index: 2, kind: input, shape index: {}]
  %s3 = inlined_call_operand.vmem [shape: f32[24,128], index: 3, kind: input, shape index: {}]
  %s4 = inlined_call_operand.vmem [shape: f32[2,768], index: 4, kind: input, shape index: {}]
  %s5 = inlined_call_operand.hbm [shape: bf16[128,768], index: 5, kind: input, shape index: {}]
  %s6 = inlined_call_operand.hbm [shape: bf16[128,1152], index: 6, kind: input, shape index: {}]
  %s7 = inlined_call_operand.hbm [shape: bf16[512,128], index: 7, kind: input, shape index: {}]
  %s8 = inlined_call_operand.vmem [shape: f32[8,128], index: 8, kind: output, shape index: {}]
  %s9 = sld [smem:[#allocation0]]
  $region62: #{offline_rl_policy_forward.1} parent=0
    _
  %s11 = ssub.s32 1, %s9
  %s12 = scalar_select 0, %s11, %s9
  $region1: #{offline_rl_policy_forward.1} parent=0
    #allocation2 [shape = 'u8[512]{0}', space=smem, size = 0x200, scoped, tag = 'input window, operand 0, single buffered']
    #allocation3 [shape = 's32[1]{0}', space=sflag, size = 0x4, scoped, tag = 'scoped memory for offline_rl_policy_forward.1']
    #allocation4 [shape = 's32[1]{0}', space=sflag, size = 0x4, scoped, tag = 'scoped memory for offline_rl_policy_forward.1']
    #allocation5 [shape = 'u8[53248]{0}', space=vmem, size = 0xd000, scoped, tag = 'input window, operand 2, single buffered']
    #allocation6 [shape = 'u8[196608]{0}', space=vmem, size = 0x30000, scoped, tag = 'input window, operand 5, single buffered']
    #allocation7 [shape = 's32[1]{0}', space=sflag, size = 0x4, scoped, tag = 'scoped memory for offline_rl_policy_forward.1']
    #allocation8 [shape = 'u8[294912]{0}', space=vmem, size = 0x48000, scoped, tag = 'input window, operand 6, single buffered']
    #allocation9 [shape = 'u8[131072]{0}', space=vmem, size = 0x20000, scoped, tag = 'input window, operand 7, single buffered']
    #allocation10 [shape = 's32[1]{0}', space=sflag, size = 0x4, scoped, tag = 'scoped memory for offline_rl_policy_forward.1']
    %13 = vsyncpa [#allocation4], 0
    %14 = vsyncpa [#allocation3], 0
    %15 = vsyncpa [#allocation7], 0
    %16 = vsyncpa [#allocation10], 0
    // Predicated region
    $region2: #{offline_rl_policy_forward.1} parent=1 // pred_check
      _
    $region3: #{offline_rl_policy_forward.1} parent=1 // pred_check_branch
      %18 = sbr.rel (0) target = $region5
    $region4: #{offline_rl_policy_forward.1} parent=1 // pred_region
      %s20 = ssub.s32 16, 16
      %21 = vsyncadd [#allocation4], %s20
      %s23 = sshll.u32 %s0, 4
      %s24 = int_to_ptr.vmem [resolvable:$true] %s23
      %26 = dma.vmem_to_smem %s24, 16, [#allocation2], [#allocation4]
    $region5: #{offline_rl_policy_forward.1} parent=1 // pred_fallthru
      _
    // Predicated region
    $region6: #{offline_rl_policy_forward.1} parent=1 // pred_check
      _
    $region7: #{offline_rl_policy_forward.1} parent=1 // pred_check_branch
      %28 = sbr.rel (0) target = $region9
    $region8: #{offline_rl_policy_forward.1} parent=1 // pred_region
      _
    $region9: #{offline_rl_policy_forward.1} parent=1 // pred_fallthru
      _
    // Predicated region
    $region10: #{offline_rl_policy_forward.1} parent=1 // pred_check
      _
    $region11: #{offline_rl_policy_forward.1} parent=1 // pred_check_branch
      %30 = sbr.rel (0) target = $region13
    $region12: #{offline_rl_policy_forward.1} parent=1 // pred_region
      %s32 = ssub.s32 1664, 1664
      %33 = vsyncadd [#allocation3], %s32
      %s34 = sshll.u32 [#allocation5], 4
      %s35 = int_to_ptr.vmem [resolvable:$true] %s34
      %40 = dma.hbm_to_vmem [thread:$0]  %s2, 1664, %s35, [#allocation3], 128, 128, 8
    $region13: #{offline_rl_policy_forward.1} parent=1 // pred_fallthru
      _
    // Predicated region
    $region14: #{offline_rl_policy_forward.1} parent=1 // pred_check
      _
    $region15: #{offline_rl_policy_forward.1} parent=1 // pred_check_branch
      %42 = sbr.rel (0) target = $region17
    $region16: #{offline_rl_policy_forward.1} parent=1 // pred_region
      _
    $region17: #{offline_rl_policy_forward.1} parent=1 // pred_fallthru
      _
    // Predicated region
    $region18: #{offline_rl_policy_forward.1} parent=1 // pred_check
      _
    $region19: #{offline_rl_policy_forward.1} parent=1 // pred_check_branch
      %44 = sbr.rel (0) target = $region21
    $region20: #{offline_rl_policy_forward.1} parent=1 // pred_region
      _
    $region21: #{offline_rl_policy_forward.1} parent=1 // pred_fallthru
      _
    // Predicated region
    $region22: #{offline_rl_policy_forward.1} parent=1 // pred_check
      _
    $region23: #{offline_rl_policy_forward.1} parent=1 // pred_check_branch
      %46 = sbr.rel (0) target = $region25
    $region24: #{offline_rl_policy_forward.1} parent=1 // pred_region
      %s48 = ssub.s32 6144, 6144
      %49 = vsyncadd [#allocation7], %s48
      %s50 = sshll.u32 [#allocation6], 4
      %s51 = int_to_ptr.vmem [resolvable:$true] %s50
      %56 = dma.hbm_to_vmem [thread:$0]  %s5, 6144, %s51, [#allocation7], 384, 384, 24
    $region25: #{offline_rl_policy_forward.1} parent=1 // pred_fallthru
      _
    // Predicated region
    $region26: #{offline_rl_policy_forward.1} parent=1 // pred_check
      _
    $region27: #{offline_rl_policy_forward.1} parent=1 // pred_check_branch
      %58 = sbr.rel (0) target = $region29
    $region28: #{offline_rl_policy_forward.1} parent=1 // pred_region
      %s60 = ssub.s32 9216, 9216
      %61 = vsyncadd [#allocation7], %s60
      %s62 = sshll.u32 [#allocation8], 4
      %s63 = int_to_ptr.vmem [resolvable:$true] %s62
      %68 = dma.hbm_to_vmem [thread:$0]  %s6, 9216, %s63, [#allocation7], 576, 576, 36
    $region29: #{offline_rl_policy_forward.1} parent=1 // pred_fallthru
      _
    // Predicated region
    $region30: #{offline_rl_policy_forward.1} parent=1 // pred_check
      _
    $region31: #{offline_rl_policy_forward.1} parent=1 // pred_check_branch
      %70 = sbr.rel (0) target = $region33
    $region32: #{offline_rl_policy_forward.1} parent=1 // pred_region
      %s72 = ssub.s32 4096, 4096
      %73 = vsyncadd [#allocation10], %s72
      %s74 = sshll.u32 [#allocation9], 4
      %s75 = int_to_ptr.vmem [resolvable:$true] %s74
      %80 = dma.hbm_to_vmem [thread:$0]  %s7, 4096, %s75, [#allocation10], 64, 64, 4
    $region33: #{offline_rl_policy_forward.1} parent=1 // pred_fallthru
      _
    // Predicated region
    $region34: #{offline_rl_policy_forward.1} parent=1 // pred_check
      _
    $region35: #{offline_rl_policy_forward.1} parent=1 // pred_check_branch
      %82 = sbr.rel (0) target = $region37
    $region36: #{offline_rl_policy_forward.1} parent=1 // pred_region
      %83 = dma.done [#allocation4], 16
    $region37: #{offline_rl_policy_forward.1} parent=1 // pred_fallthru
      _
    // Predicated region
    $region38: #{offline_rl_policy_forward.1} parent=1 // pred_check
      _
    $region39: #{offline_rl_policy_forward.1} parent=1 // pred_check_branch
      %85 = sbr.rel (0) target = $region41
    $region40: #{offline_rl_policy_forward.1} parent=1 // pred_region
      %86 = dma.done [#allocation3], 1664
    $region41: #{offline_rl_policy_forward.1} parent=1 // pred_fallthru
      _
    // Predicated region
    $region42: #{offline_rl_policy_forward.1} parent=1 // pred_check
      _
    $region43: #{offline_rl_policy_forward.1} parent=1 // pred_check_branch
      %88 = sbr.rel (0) target = $region45
    $region44: #{offline_rl_policy_forward.1} parent=1 // pred_region
      %89 = dma.done [#allocation7], 6144
    $region45: #{offline_rl_policy_forward.1} parent=1 // pred_fallthru
      _
    // Predicated region
    $region46: #{offline_rl_policy_forward.1} parent=1 // pred_check
      _
    $region47: #{offline_rl_policy_forward.1} parent=1 // pred_check_branch
      %91 = sbr.rel (0) target = $region49
    $region48: #{offline_rl_policy_forward.1} parent=1 // pred_region
      %92 = dma.done [#allocation7], 9216
    $region49: #{offline_rl_policy_forward.1} parent=1 // pred_fallthru
      _
    // Predicated region
    $region50: #{offline_rl_policy_forward.1} parent=1 // pred_check
      _
    $region51: #{offline_rl_policy_forward.1} parent=1 // pred_check_branch
      %94 = sbr.rel (0) target = $region53
    $region52: #{offline_rl_policy_forward.1} parent=1 // pred_region
      %95 = dma.done [#allocation10], 4096
    $region53: #{offline_rl_policy_forward.1} parent=1 // pred_fallthru
      _
    %96 = sfence
    %s98 = sld [smem:[#allocation2]]
    %s99 = scalar_lea.vmem [#allocation5], %s98
    %v100 = vld [vmem:[%s99] sm:$0x1]
    %s101 = sld [smem:[#allocation2 + $0x1]]
    %s102 = scalar_lea.vmem [#allocation5], %s101
    %v103 = vld [vmem:[%s102] sm:$0x1]
    %s104 = sld [smem:[#allocation2 + $0x2]]
    %s105 = scalar_lea.vmem [#allocation5], %s104
    %v106 = vld [vmem:[%s105] sm:$0x1]
    %s107 = sld [smem:[#allocation2 + $0x3]]
    %s108 = scalar_lea.vmem [#allocation5], %s107
    %v109 = vld [vmem:[%s108] sm:$0x1]
    %s110 = sld [smem:[#allocation2 + $0x4]]
    %s111 = scalar_lea.vmem [#allocation5], %s110
    %v112 = vld [vmem:[%s111] sm:$0x1]
    %s113 = sld [smem:[#allocation2 + $0x5]]
    %s114 = scalar_lea.vmem [#allocation5], %s113
    %v115 = vld [vmem:[%s114] sm:$0x1]
    %s116 = sld [smem:[#allocation2 + $0x6]]
    %s117 = scalar_lea.vmem [#allocation5], %s116
    %v118 = vld [vmem:[%s117] sm:$0x1]
    %s119 = sld [smem:[#allocation2 + $0x7]]
    %s120 = scalar_lea.vmem [#allocation5], %s119
    %v121 = vld [vmem:[%s120] sm:$0x1]
    %v123 = vrot.slane %v103, 7
    %v126 = vrot.slane %v106, 6
    %v129 = vrot.slane %v109, 5
    %v132 = vrot.slane %v112, 4
    %v135 = vrot.slane %v115, 3
    %v138 = vrot.slane %v118, 2
    %v141 = vrot.slane %v121, 1
    %vm143 = vcmask 1040384
    %v144 = vsel %vm143, %v100, %v123
    %vm145 = vcmask 1041408
    %v146 = vsel %vm145, %v144, %v126
    %vm147 = vcmask 1042432
    %v148 = vsel %vm147, %v146, %v129
    %vm149 = vcmask 1043456
    %v150 = vsel %vm149, %v148, %v132
    %vm151 = vcmask 1044480
    %v152 = vsel %vm151, %v150, %v135
    %vm153 = vcmask 1045504
    %v154 = vsel %vm153, %v152, %v138
    %vm155 = vcmask 1046528
    %v156 = vsel %vm155, %v154, %v141
    %v157 = vld [vmem:[%s1] sm:$0xff]
    %v158 = vpack.c.bf16 %v157, %v157
    %v159 = vld [vmem:[#allocation6] sm:$0xff]
    %v160 = vld [vmem:[#allocation6 + $0x8] sm:$0xff]
    %v161 = vld [vmem:[#allocation6 + $0x10] sm:$0xff]
    %v162 = vld [vmem:[#allocation6 + $0x18] sm:$0xff]
    %v163 = vld [vmem:[#allocation6 + $0x20] sm:$0xff]
    %v164 = vld [vmem:[#allocation6 + $0x28] sm:$0xff]
    %v165 = vld [vmem:[#allocation6 + $0x30] sm:$0xff]
    %v166 = vld [vmem:[#allocation6 + $0x38] sm:$0xff]
    %v167 = vld [vmem:[#allocation6 + $0x40] sm:$0xff]
    %v168 = vld [vmem:[#allocation6 + $0x48] sm:$0xff]
    %v169 = vld [vmem:[#allocation6 + $0x50] sm:$0xff]
    %v170 = vld [vmem:[#allocation6 + $0x58] sm:$0xff]
    %v171 = vld [vmem:[#allocation6 + $0x60] sm:$0xff]
    %v172 = vld [vmem:[#allocation6 + $0x68] sm:$0xff]
    %v173 = vld [vmem:[#allocation6 + $0x70] sm:$0xff]
    %v174 = vld [vmem:[#allocation6 + $0x78] sm:$0xff]
    %v175 = vld [vmem:[#allocation6 + $0x80] sm:$0xff]
    %v176 = vld [vmem:[#allocation6 + $0x88] sm:$0xff]
    %v177 = vld [vmem:[#allocation6 + $0x90] sm:$0xff]
    %v178 = vld [vmem:[#allocation6 + $0x98] sm:$0xff]
    %v179 = vld [vmem:[#allocation6 + $0xa0] sm:$0xff]
    %v180 = vld [vmem:[#allocation6 + $0xa8] sm:$0xff]
    %v181 = vld [vmem:[#allocation6 + $0xb0] sm:$0xff]
    %v182 = vld [vmem:[#allocation6 + $0xb8] sm:$0xff]
    %v183 = vld [vmem:[#allocation6 + $0xc0] sm:$0xff]
    %v184 = vld [vmem:[#allocation6 + $0xc8] sm:$0xff]
    %v185 = vld [vmem:[#allocation6 + $0xd0] sm:$0xff]
    %v186 = vld [vmem:[#allocation6 + $0xd8] sm:$0xff]
    %v187 = vld [vmem:[#allocation6 + $0xe0] sm:$0xff]
    %v188 = vld [vmem:[#allocation6 + $0xe8] sm:$0xff]
    %v189 = vld [vmem:[#allocation6 + $0xf0] sm:$0xff]
    %v190 = vld [vmem:[#allocation6 + $0xf8] sm:$0xff]
    %v191 = vld [vmem:[#allocation6 + $0x100] sm:$0xff]
    %v192 = vld [vmem:[#allocation6 + $0x108] sm:$0xff]
    %v193 = vld [vmem:[#allocation6 + $0x110] sm:$0xff]
    %v194 = vld [vmem:[#allocation6 + $0x118] sm:$0xff]
    %v195 = vld [vmem:[#allocation6 + $0x120] sm:$0xff]
    %v196 = vld [vmem:[#allocation6 + $0x128] sm:$0xff]
    %v197 = vld [vmem:[#allocation6 + $0x130] sm:$0xff]
    %v198 = vld [vmem:[#allocation6 + $0x138] sm:$0xff]
    %v199 = vld [vmem:[#allocation6 + $0x140] sm:$0xff]
    %v200 = vld [vmem:[#allocation6 + $0x148] sm:$0xff]
    %v201 = vld [vmem:[#allocation6 + $0x150] sm:$0xff]
    %v202 = vld [vmem:[#allocation6 + $0x158] sm:$0xff]
    %v203 = vld [vmem:[#allocation6 + $0x160] sm:$0xff]
    %v204 = vld [vmem:[#allocation6 + $0x168] sm:$0xff]
    %v205 = vld [vmem:[#allocation6 + $0x170] sm:$0xff]
    %v206 = vld [vmem:[#allocation6 + $0x178] sm:$0xff]
    %v207 = vld [vmem:[%s4] ss:$2 sm:$0x3f]
    %v209 = vlaneseq
    %v210 = vshrl.u32 %v209, 7
    %v211 = vsub.s32 0, %v210
    %v212 = vrot.slane %v207, %v211
    %v213 = vlaneseq
    %v214 = vshrl.u32 %v213, 7
    %v215 = vsub.s32 1, %v214
    %v216 = vrot.slane %v207, %v215
    %v217 = vlaneseq
    %v218 = vshrl.u32 %v217, 7
    %v219 = vsub.s32 2, %v218
    %v220 = vrot.slane %v207, %v219
    %v221 = vlaneseq
    %v222 = vshrl.u32 %v221, 7
    %v223 = vsub.s32 3, %v222
    %v224 = vrot.slane %v207, %v223
    %v225 = vlaneseq
    %v226 = vshrl.u32 %v225, 7
    %v227 = vsub.s32 4, %v226
    %v228 = vrot.slane %v207, %v227
    %v229 = vlaneseq
    %v230 = vshrl.u32 %v229, 7
    %v231 = vsub.s32 5, %v230
    %v232 = vrot.slane %v207, %v231
    %v287 = vunpack.c.l.b16 %v159
    %v288 = vunpack.c.h.b16 %v159
    %v289 = vunpack.c.l.b16 %v160
    %v290 = vunpack.c.h.b16 %v160
    %v291 = vunpack.c.l.b16 %v161
    %v292 = vunpack.c.h.b16 %v161
    %v293 = vunpack.c.l.b16 %v162
    %v294 = vunpack.c.h.b16 %v162
    %v295 = vunpack.c.l.b16 %v163
    %v296 = vunpack.c.h.b16 %v163
    %v297 = vunpack.c.l.b16 %v164
    %v298 = vunpack.c.h.b16 %v164
    %v299 = vunpack.c.l.b16 %v165
    %v300 = vunpack.c.h.b16 %v165
    %v301 = vunpack.c.l.b16 %v166
    %v302 = vunpack.c.h.b16 %v166
    %v303 = vunpack.c.l.b16 %v167
    %v304 = vunpack.c.h.b16 %v167
    %v305 = vunpack.c.l.b16 %v168
    %v306 = vunpack.c.h.b16 %v168
    %v307 = vunpack.c.l.b16 %v169
    %v308 = vunpack.c.h.b16 %v169
    %v309 = vunpack.c.l.b16 %v170
    %v310 = vunpack.c.h.b16 %v170
    %v311 = vunpack.c.l.b16 %v171
    %v312 = vunpack.c.h.b16 %v171
    %v313 = vunpack.c.l.b16 %v172
    %v314 = vunpack.c.h.b16 %v172
    %v315 = vunpack.c.l.b16 %v173
    %v316 = vunpack.c.h.b16 %v173
    %v317 = vunpack.c.l.b16 %v174
    %v318 = vunpack.c.h.b16 %v174
    %v319 = vunpack.c.l.b16 %v175
    %v320 = vunpack.c.h.b16 %v175
    %v321 = vunpack.c.l.b16 %v176
    %v322 = vunpack.c.h.b16 %v176
    %v323 = vunpack.c.l.b16 %v177
    %v324 = vunpack.c.h.b16 %v177
    %v325 = vunpack.c.l.b16 %v178
    %v326 = vunpack.c.h.b16 %v178
    %v327 = vunpack.c.l.b16 %v179
    %v328 = vunpack.c.h.b16 %v179
    %v329 = vunpack.c.l.b16 %v180
    %v330 = vunpack.c.h.b16 %v180
    %v331 = vunpack.c.l.b16 %v181
    %v332 = vunpack.c.h.b16 %v181
    %v333 = vunpack.c.l.b16 %v182
    %v334 = vunpack.c.h.b16 %v182
    %v335 = vunpack.c.l.b16 %v183
    %v336 = vunpack.c.h.b16 %v183
    %v337 = vunpack.c.l.b16 %v184
    %v338 = vunpack.c.h.b16 %v184
    %v339 = vunpack.c.l.b16 %v185
    %v340 = vunpack.c.h.b16 %v185
    %v341 = vunpack.c.l.b16 %v186
    %v342 = vunpack.c.h.b16 %v186
    %v343 = vunpack.c.l.b16 %v187
    %v344 = vunpack.c.h.b16 %v187
    %v345 = vunpack.c.l.b16 %v188
    %v346 = vunpack.c.h.b16 %v188
    %v347 = vunpack.c.l.b16 %v189
    %v348 = vunpack.c.h.b16 %v189
    %v349 = vunpack.c.l.b16 %v190
    %v350 = vunpack.c.h.b16 %v190
    %v351 = vunpack.c.l.b16 %v191
    %v352 = vunpack.c.h.b16 %v191
    %v353 = vunpack.c.l.b16 %v192
    %v354 = vunpack.c.h.b16 %v192
    %v355 = vunpack.c.l.b16 %v193
    %v356 = vunpack.c.h.b16 %v193
    %v357 = vunpack.c.l.b16 %v194
    %v358 = vunpack.c.h.b16 %v194
    %v359 = vunpack.c.l.b16 %v195
    %v360 = vunpack.c.h.b16 %v195
    %v361 = vunpack.c.l.b16 %v196
    %v362 = vunpack.c.h.b16 %v196
    %v363 = vunpack.c.l.b16 %v197
    %v364 = vunpack.c.h.b16 %v197
    %v365 = vunpack.c.l.b16 %v198
    %v366 = vunpack.c.h.b16 %v198
    %v367 = vunpack.c.l.b16 %v199
    %v368 = vunpack.c.h.b16 %v199
    %v369 = vunpack.c.l.b16 %v200
    %v370 = vunpack.c.h.b16 %v200
    %v371 = vunpack.c.l.b16 %v201
    %v372 = vunpack.c.h.b16 %v201
    %v373 = vunpack.c.l.b16 %v202
    %v374 = vunpack.c.h.b16 %v202
    %v375 = vunpack.c.l.b16 %v203
    %v376 = vunpack.c.h.b16 %v203
    %v377 = vunpack.c.l.b16 %v204
    %v378 = vunpack.c.h.b16 %v204
    %v379 = vunpack.c.l.b16 %v205
    %v380 = vunpack.c.h.b16 %v205
    %v381 = vunpack.c.l.b16 %v206
    %v382 = vunpack.c.h.b16 %v206
    %v383 = vpack.c.b16 %v293, %v287
    %v384 = vpack.c.b16 %v294, %v288
    %v385 = vpack.c.b16 %v295, %v289
    %v386 = vpack.c.b16 %v296, %v290
    %v387 = vpack.c.b16 %v297, %v291
    %v388 = vpack.c.b16 %v298, %v292
    %v389 = vpack.c.b16 %v305, %v299
    %v390 = vpack.c.b16 %v306, %v300
    %v391 = vpack.c.b16 %v307, %v301
    %v392 = vpack.c.b16 %v308, %v302
    %v393 = vpack.c.b16 %v309, %v303
    %v394 = vpack.c.b16 %v310, %v304
    %v395 = vpack.c.b16 %v317, %v311
    %v396 = vpack.c.b16 %v318, %v312
    %v397 = vpack.c.b16 %v319, %v313
    %v398 = vpack.c.b16 %v320, %v314
    %v399 = vpack.c.b16 %v321, %v315
    %v400 = vpack.c.b16 %v322, %v316
    %v401 = vpack.c.b16 %v329, %v323
    %v402 = vpack.c.b16 %v330, %v324
    %v403 = vpack.c.b16 %v331, %v325
    %v404 = vpack.c.b16 %v332, %v326
    %v405 = vpack.c.b16 %v333, %v327
    %v406 = vpack.c.b16 %v334, %v328
    %v407 = vpack.c.b16 %v341, %v335
    %v408 = vpack.c.b16 %v342, %v336
    %v409 = vpack.c.b16 %v343, %v337
    %v410 = vpack.c.b16 %v344, %v338
    %v411 = vpack.c.b16 %v345, %v339
    %v412 = vpack.c.b16 %v346, %v340
    %v413 = vpack.c.b16 %v353, %v347
    %v414 = vpack.c.b16 %v354, %v348
    %v415 = vpack.c.b16 %v355, %v349
    %v416 = vpack.c.b16 %v356, %v350
    %v417 = vpack.c.b16 %v357, %v351
    %v418 = vpack.c.b16 %v358, %v352
    %v419 = vpack.c.b16 %v365, %v359
    %v420 = vpack.c.b16 %v366, %v360
    %v421 = vpack.c.b16 %v367, %v361
    %v422 = vpack.c.b16 %v368, %v362
    %v423 = vpack.c.b16 %v369, %v363
    %v424 = vpack.c.b16 %v370, %v364
    %v425 = vpack.c.b16 %v377, %v371
    %v426 = vpack.c.b16 %v378, %v372
    %v427 = vpack.c.b16 %v379, %v373
    %v428 = vpack.c.b16 %v380, %v374
    %v429 = vpack.c.b16 %v381, %v375
    %v430 = vpack.c.b16 %v382, %v376
    %479 = vmatprep.subr.bf16.mxu0 %v426
    %480 = vmatpush1.bf16.msra.mxu0 %v425
    %481 = vmatprep.subr.bf16.mxu0 %v420
    %482 = vmatpush1.bf16.msra.mxu0 %v419
    %483 = vmatprep.subr.bf16.mxu0 %v414
    %484 = vmatpush1.bf16.msra.mxu0 %v413
    %485 = vmatprep.subr.bf16.mxu0 %v408
    %486 = vmatpush1.bf16.msra.mxu0 %v407
    %487 = vmatprep.subr.bf16.mxu0 %v402
    %488 = vmatpush1.bf16.msra.mxu0 %v401
    %489 = vmatprep.subr.bf16.mxu0 %v396
    %490 = vmatpush1.bf16.msra.mxu0 %v395
    %491 = vmatprep.subr.bf16.mxu0 %v390
    %492 = vmatpush1.bf16.msra.mxu0 %v389
    %493 = vmatprep.subr.bf16.mxu0 %v384
    %494 = vmatpush1.bf16.msra.mxu0 %v383
    %495 = vmatprep.subr.bf16.mxu0 0
    %496 = vmatpush2.bf16.msra.mxu0 0
    %497 = vmatprep.subr.bf16.mxu0 0
    %498 = vmatpush2.bf16.msra.mxu0 0
    %499 = vmatprep.subr.bf16.mxu0 0
    %500 = vmatpush2.bf16.msra.mxu0 0
    %501 = vmatprep.subr.bf16.mxu0 0
    %502 = vmatpush2.bf16.msra.mxu0 0
    %503 = vmatprep.subr.bf16.mxu0 0
    %504 = vmatpush2.bf16.msra.mxu0 0
    %505 = vmatprep.subr.bf16.mxu0 0
    %506 = vmatpush2.bf16.msra.mxu0 0
    %507 = vmatprep.subr.bf16.mxu0 0
    %508 = vmatpush2.bf16.msra.mxu0 0
    %509 = vmatprep.subr.bf16.mxu0 0
    %510 = vmatpush2.bf16.msra.mxu0 0
    %511 = vmatprep.mubr.bf16.mxu0 0
    %512 = vmatmul.mubr.bf16.gmra.mxu0 %v158
    %v513 = vpop.f32.mrf.mxu0
    %v514 = vadd.f32 %v212, %v513
    %v515 = vpop.f32.mrf.mxu0
    %v516 = vadd.f32 %v216, %v515
    %v517 = vpop.f32.mrf.mxu0
    %v518 = vpop.f32.mrf.mxu0
    %519 = vdwg.mxu0
    %520 = vmatprep.subr.bf16.mxu0 %v428
    %521 = vmatpush1.bf16.msra.mxu0 %v427
    %522 = vmatprep.subr.bf16.mxu0 %v422
    %523 = vmatpush1.bf16.msra.mxu0 %v421
    %524 = vmatprep.subr.bf16.mxu0 %v416
    %525 = vmatpush1.bf16.msra.mxu0 %v415
    %526 = vmatprep.subr.bf16.mxu0 %v410
    %527 = vmatpush1.bf16.msra.mxu0 %v409
    %528 = vmatprep.subr.bf16.mxu0 %v404
    %529 = vmatpush1.bf16.msra.mxu0 %v403
    %530 = vmatprep.subr.bf16.mxu0 %v398
    %531 = vmatpush1.bf16.msra.mxu0 %v397
    %532 = vmatprep.subr.bf16.mxu0 %v392
    %533 = vmatpush1.bf16.msra.mxu0 %v391
    %534 = vmatprep.subr.bf16.mxu0 %v386
    %535 = vmatpush1.bf16.msra.mxu0 %v385
    %536 = vmatprep.subr.bf16.mxu0 0
    %537 = vmatpush2.bf16.msra.mxu0 0
    %538 = vmatprep.subr.bf16.mxu0 0
    %539 = vmatpush2.bf16.msra.mxu0 0
    %540 = vmatprep.subr.bf16.mxu0 0
    %541 = vmatpush2.bf16.msra.mxu0 0
    %542 = vmatprep.subr.bf16.mxu0 0
    %543 = vmatpush2.bf16.msra.mxu0 0
    %544 = vmatprep.subr.bf16.mxu0 0
    %545 = vmatpush2.bf16.msra.mxu0 0
    %546 = vmatprep.subr.bf16.mxu0 0
    %547 = vmatpush2.bf16.msra.mxu0 0
    %548 = vmatprep.subr.bf16.mxu0 0
    %549 = vmatpush2.bf16.msra.mxu0 0
    %550 = vmatprep.subr.bf16.mxu0 0
    %551 = vmatpush2.bf16.msra.mxu0 0
    %552 = vmatprep.mubr.bf16.mxu0 0
    %553 = vmatmul.mubr.bf16.gmra.mxu0 %v158
    %v554 = vpop.f32.mrf.mxu0
    %v555 = vadd.f32 %v220, %v554
    %v556 = vpop.f32.mrf.mxu0
    %v557 = vadd.f32 %v224, %v556
    %v558 = vpop.f32.mrf.mxu0
    %v559 = vpop.f32.mrf.mxu0
    %560 = vdwg.mxu0
    %561 = vmatprep.subr.bf16.mxu0 %v430
    %562 = vmatpush1.bf16.msra.mxu0 %v429
    %563 = vmatprep.subr.bf16.mxu0 %v424
    %564 = vmatpush1.bf16.msra.mxu0 %v423
    %565 = vmatprep.subr.bf16.mxu0 %v418
    %566 = vmatpush1.bf16.msra.mxu0 %v417
    %567 = vmatprep.subr.bf16.mxu0 %v412
    %568 = vmatpush1.bf16.msra.mxu0 %v411
    %569 = vmatprep.subr.bf16.mxu0 %v406
    %570 = vmatpush1.bf16.msra.mxu0 %v405
    %571 = vmatprep.subr.bf16.mxu0 %v400
    %572 = vmatpush1.bf16.msra.mxu0 %v399
    %573 = vmatprep.subr.bf16.mxu0 %v394
    %574 = vmatpush1.bf16.msra.mxu0 %v393
    %575 = vmatprep.subr.bf16.mxu0 %v388
    %576 = vmatpush1.bf16.msra.mxu0 %v387
    %577 = vmatprep.subr.bf16.mxu0 0
    %578 = vmatpush2.bf16.msra.mxu0 0
    %579 = vmatprep.subr.bf16.mxu0 0
    %580 = vmatpush2.bf16.msra.mxu0 0
    %581 = vmatprep.subr.bf16.mxu0 0
    %582 = vmatpush2.bf16.msra.mxu0 0
    %583 = vmatprep.subr.bf16.mxu0 0
    %584 = vmatpush2.bf16.msra.mxu0 0
    %585 = vmatprep.subr.bf16.mxu0 0
    %586 = vmatpush2.bf16.msra.mxu0 0
    %587 = vmatprep.subr.bf16.mxu0 0
    %588 = vmatpush2.bf16.msra.mxu0 0
    %589 = vmatprep.subr.bf16.mxu0 0
    %590 = vmatpush2.bf16.msra.mxu0 0
    %591 = vmatprep.subr.bf16.mxu0 0
    %592 = vmatpush2.bf16.msra.mxu0 0
    %593 = vmatprep.mubr.bf16.mxu0 0
    %594 = vmatmul.mubr.bf16.gmra.mxu0 %v158
    %v595 = vpop.f32.mrf.mxu0
    %v596 = vadd.f32 %v228, %v595
    %v597 = vpop.f32.mrf.mxu0
    %v598 = vadd.f32 %v232, %v597
    %v599 = vpop.f32.mrf.mxu0
    %v600 = vpop.f32.mrf.mxu0
    %601 = vdwg.mxu0
    %v602 = vadd.f32 %v514, %v156
    %v603 = vadd.f32 %v516, %v156
    %v604 = vadd.f32 %v555, %v156
    %v605 = vadd.f32 %v557, %v156
    %v606 = vadd.f32 %v596, %v156
    %v607 = vadd.f32 %v598, %v156
    %v608 = vld [vmem:[%s3] sm:$0x1]
    %v609 = vld [vmem:[%s3 + $0x1] sm:$0x1]
    %610 = vadd.xlane.f32.xlu0 %v602
    %v611 = vpop.xlane.xlu0 %610
    %612 = vadd.xlane.f32.xlu0 %v603
    %v613 = vpop.xlane.xlu0 %612
    %614 = vadd.xlane.f32.xlu0 %v604
    %v615 = vpop.xlane.xlu0 %614
    %616 = vadd.xlane.f32.xlu0 %v605
    %v617 = vpop.xlane.xlu0 %616
    %618 = vadd.xlane.f32.xlu0 %v606
    %v619 = vpop.xlane.xlu0 %618
    %620 = vadd.xlane.f32.xlu0 %v607
    %v621 = vpop.xlane.xlu0 %620
    %v622 = vrcp.pop 128.0
    %v623 = vmul.f32 %v611, %v622
    %v624 = vmul.f32 %v613, %v622
    %v625 = vmul.f32 %v615, %v622
    %v626 = vmul.f32 %v617, %v622
    %v627 = vmul.f32 %v619, %v622
    %v628 = vmul.f32 %v621, %v622
    %v629 = vsub.f32 %v602, %v623
    %v630 = vsub.f32 %v603, %v624
    %v631 = vsub.f32 %v604, %v625
    %v632 = vsub.f32 %v605, %v626
    %v633 = vsub.f32 %v606, %v627
    %v634 = vsub.f32 %v607, %v628
    %v635 = vmul.f32 %v629, %v629
    %v636 = vmul.f32 %v630, %v630
    %v637 = vmul.f32 %v631, %v631
    %v638 = vmul.f32 %v632, %v632
    %v639 = vmul.f32 %v633, %v633
    %v640 = vmul.f32 %v634, %v634
    %641 = vadd.xlane.f32.xlu0 %v635
    %v642 = vpop.xlane.xlu0 %641
    %643 = vadd.xlane.f32.xlu0 %v636
    %v644 = vpop.xlane.xlu0 %643
    %645 = vadd.xlane.f32.xlu0 %v637
    %v646 = vpop.xlane.xlu0 %645
    %647 = vadd.xlane.f32.xlu0 %v638
    %v648 = vpop.xlane.xlu0 %647
    %649 = vadd.xlane.f32.xlu0 %v639
    %v650 = vpop.xlane.xlu0 %649
    %651 = vadd.xlane.f32.xlu0 %v640
    %v652 = vpop.xlane.xlu0 %651
    %v653 = vmul.f32 %v642, %v622
    %v654 = vmul.f32 %v644, %v622
    %v655 = vmul.f32 %v646, %v622
    %v656 = vmul.f32 %v648, %v622
    %v657 = vmul.f32 %v650, %v622
    %v658 = vmul.f32 %v652, %v622
    %v659 = vadd.f32 %v653, 1e-05
    %v660 = vadd.f32 %v654, 1e-05
    %v661 = vadd.f32 %v655, 1e-05
    %v662 = vadd.f32 %v656, 1e-05
    %v663 = vadd.f32 %v657, 1e-05
    %v664 = vadd.f32 %v658, 1e-05
    %v665 = vrsqrt.pop %v659
    %v666 = vrsqrt.pop %v660
    %v667 = vrsqrt.pop %v661
    %v668 = vrsqrt.pop %v662
    %v669 = vrsqrt.pop %v663
    %v670 = vrsqrt.pop %v664
    %v671 = vmul.f32 %v629, %v665
    %v672 = vmul.f32 %v630, %v666
    %v673 = vmul.f32 %v631, %v667
    %v674 = vmul.f32 %v632, %v668
    %v675 = vmul.f32 %v633, %v669
    %v676 = vmul.f32 %v634, %v670
    %v677 = vlaneseq
    %v678 = vshrl.u32 %v677, 7
    %v679 = vsub.s32 0, %v678
    %v680 = vrot.slane %v608, %v679
    %v681 = vmul.f32 %v671, %v680
    %v682 = vmul.f32 %v672, %v680
    %v683 = vmul.f32 %v673, %v680
    %v684 = vmul.f32 %v674, %v680
    %v685 = vmul.f32 %v675, %v680
    %v686 = vmul.f32 %v676, %v680
    %v687 = vlaneseq
    %v688 = vshrl.u32 %v687, 7
    %v689 = vsub.s32 0, %v688
    %v690 = vrot.slane %v609, %v689
    %v691 = vadd.f32 %v681, %v690
    %v692 = vadd.f32 %v682, %v690
    %v693 = vadd.f32 %v683, %v690
    %v694 = vadd.f32 %v684, %v690
    %v695 = vadd.f32 %v685, %v690
    %v696 = vadd.f32 %v686, %v690
    %v697 = vld [vmem:[%s3 + $0x2] sm:$0x1]
    %v698 = vld [vmem:[%s3 + $0x3] sm:$0x1]
    %699 = vadd.xlane.f32.xlu0 %v691
    %v700 = vpop.xlane.xlu0 %699
    %701 = vadd.xlane.f32.xlu0 %v692
    %v702 = vpop.xlane.xlu0 %701
    %703 = vadd.xlane.f32.xlu0 %v693
    %v704 = vpop.xlane.xlu0 %703
    %705 = vadd.xlane.f32.xlu0 %v694
    %v706 = vpop.xlane.xlu0 %705
    %707 = vadd.xlane.f32.xlu0 %v695
    %v708 = vpop.xlane.xlu0 %707
    %709 = vadd.xlane.f32.xlu0 %v696
    %v710 = vpop.xlane.xlu0 %709
    %v711 = vmul.f32 %v700, %v622
    %v712 = vmul.f32 %v702, %v622
    %v713 = vmul.f32 %v704, %v622
    %v714 = vmul.f32 %v706, %v622
    %v715 = vmul.f32 %v708, %v622
    %v716 = vmul.f32 %v710, %v622
    %v717 = vsub.f32 %v691, %v711
    %v718 = vsub.f32 %v692, %v712
    %v719 = vsub.f32 %v693, %v713
    %v720 = vsub.f32 %v694, %v714
    %v721 = vsub.f32 %v695, %v715
    %v722 = vsub.f32 %v696, %v716
    %v723 = vmul.f32 %v717, %v717
    %v724 = vmul.f32 %v718, %v718
    %v725 = vmul.f32 %v719, %v719
    %v726 = vmul.f32 %v720, %v720
    %v727 = vmul.f32 %v721, %v721
    %v728 = vmul.f32 %v722, %v722
    %729 = vadd.xlane.f32.xlu0 %v723
    %v730 = vpop.xlane.xlu0 %729
    %731 = vadd.xlane.f32.xlu0 %v724
    %v732 = vpop.xlane.xlu0 %731
    %733 = vadd.xlane.f32.xlu0 %v725
    %v734 = vpop.xlane.xlu0 %733
    %735 = vadd.xlane.f32.xlu0 %v726
    %v736 = vpop.xlane.xlu0 %735
    %737 = vadd.xlane.f32.xlu0 %v727
    %v738 = vpop.xlane.xlu0 %737
    %739 = vadd.xlane.f32.xlu0 %v728
    %v740 = vpop.xlane.xlu0 %739
    %v741 = vmul.f32 %v730, %v622
    %v742 = vmul.f32 %v732, %v622
    %v743 = vmul.f32 %v734, %v622
    %v744 = vmul.f32 %v736, %v622
    %v745 = vmul.f32 %v738, %v622
    %v746 = vmul.f32 %v740, %v622
    %v747 = vadd.f32 %v741, 1e-05
    %v748 = vadd.f32 %v742, 1e-05
    %v749 = vadd.f32 %v743, 1e-05
    %v750 = vadd.f32 %v744, 1e-05
    %v751 = vadd.f32 %v745, 1e-05
    %v752 = vadd.f32 %v746, 1e-05
    %v753 = vrsqrt.pop %v747
    %v754 = vrsqrt.pop %v748
    %v755 = vrsqrt.pop %v749
    %v756 = vrsqrt.pop %v750
    %v757 = vrsqrt.pop %v751
    %v758 = vrsqrt.pop %v752
    %v759 = vmul.f32 %v717, %v753
    %v760 = vmul.f32 %v718, %v754
    %v761 = vmul.f32 %v719, %v755
    %v762 = vmul.f32 %v720, %v756
    %v763 = vmul.f32 %v721, %v757
    %v764 = vmul.f32 %v722, %v758
    %v765 = vlaneseq
    %v766 = vshrl.u32 %v765, 7
    %v767 = vsub.s32 0, %v766
    %v768 = vrot.slane %v697, %v767
    %v769 = vmul.f32 %v759, %v768
    %v770 = vmul.f32 %v760, %v768
    %v771 = vmul.f32 %v761, %v768
    %v772 = vmul.f32 %v762, %v768
    %v773 = vmul.f32 %v763, %v768
    %v774 = vmul.f32 %v764, %v768
    %v775 = vlaneseq
    %v776 = vshrl.u32 %v775, 7
    %v777 = vsub.s32 0, %v776
    %v778 = vrot.slane %v698, %v777
    %v779 = vadd.f32 %v769, %v778
    %v780 = vadd.f32 %v770, %v778
    %v781 = vadd.f32 %v771, %v778
    %v782 = vadd.f32 %v772, %v778
    %v783 = vadd.f32 %v773, %v778
    %v784 = vadd.f32 %v774, %v778
    %v785 = vpack.c.bf16 %v780, %v779
    %v786 = vpack.c.bf16 %v782, %v781
    %v787 = vpack.c.bf16 %v784, %v783
    %v788 = vld [vmem:[#allocation8] sm:$0xff]
    %v789 = vld [vmem:[#allocation8 + $0x24] sm:$0xff]
    %v790 = vld [vmem:[#allocation8 + $0x48] sm:$0xff]
    %v791 = vld [vmem:[#allocation8 + $0x6c] sm:$0xff]
    %v792 = vld [vmem:[#allocation8 + $0x90] sm:$0xff]
    %v793 = vld [vmem:[#allocation8 + $0xb4] sm:$0xff]
    %v794 = vld [vmem:[#allocation8 + $0xd8] sm:$0xff]
    %v795 = vld [vmem:[#allocation8 + $0xfc] sm:$0xff]
    %v796 = vld [vmem:[#allocation8 + $0x120] sm:$0xff]
    %v797 = vld [vmem:[#allocation8 + $0x144] sm:$0xff]
    %v798 = vld [vmem:[#allocation8 + $0x168] sm:$0xff]
    %v799 = vld [vmem:[#allocation8 + $0x18c] sm:$0xff]
    %v800 = vld [vmem:[#allocation8 + $0x1b0] sm:$0xff]
    %v801 = vld [vmem:[#allocation8 + $0x1d4] sm:$0xff]
    %v802 = vld [vmem:[#allocation8 + $0x1f8] sm:$0xff]
    %v803 = vld [vmem:[#allocation8 + $0x21c] sm:$0xff]
    %v820 = vunpack.c.l.b16 %v788
    %v821 = vunpack.c.h.b16 %v788
    %v822 = vunpack.c.l.b16 %v789
    %v823 = vunpack.c.h.b16 %v789
    %v824 = vunpack.c.l.b16 %v790
    %v825 = vunpack.c.h.b16 %v790
    %v826 = vunpack.c.l.b16 %v791
    %v827 = vunpack.c.h.b16 %v791
    %v828 = vunpack.c.l.b16 %v792
    %v829 = vunpack.c.h.b16 %v792
    %v830 = vunpack.c.l.b16 %v793
    %v831 = vunpack.c.h.b16 %v793
    %v832 = vunpack.c.l.b16 %v794
    %v833 = vunpack.c.h.b16 %v794
    %v834 = vunpack.c.l.b16 %v795
    %v835 = vunpack.c.h.b16 %v795
    %v836 = vunpack.c.l.b16 %v796
    %v837 = vunpack.c.h.b16 %v796
    %v838 = vunpack.c.l.b16 %v797
    %v839 = vunpack.c.h.b16 %v797
    %v840 = vunpack.c.l.b16 %v798
    %v841 = vunpack.c.h.b16 %v798
    %v842 = vunpack.c.l.b16 %v799
    %v843 = vunpack.c.h.b16 %v799
    %v844 = vunpack.c.l.b16 %v800
    %v845 = vunpack.c.h.b16 %v800
    %v846 = vunpack.c.l.b16 %v801
    %v847 = vunpack.c.h.b16 %v801
    %v848 = vunpack.c.l.b16 %v802
    %v849 = vunpack.c.h.b16 %v802
    %v850 = vunpack.c.l.b16 %v803
    %v851 = vunpack.c.h.b16 %v803
    %v852 = vpack.c.b16 %v822, %v820
    %v853 = vpack.c.b16 %v823, %v821
    %v854 = vpack.c.b16 %v826, %v824
    %v855 = vpack.c.b16 %v827, %v825
    %v856 = vpack.c.b16 %v830, %v828
    %v857 = vpack.c.b16 %v831, %v829
    %v858 = vpack.c.b16 %v834, %v832
    %v859 = vpack.c.b16 %v835, %v833
    %v860 = vpack.c.b16 %v838, %v836
    %v861 = vpack.c.b16 %v839, %v837
    %v862 = vpack.c.b16 %v842, %v840
    %v863 = vpack.c.b16 %v843, %v841
    %v864 = vpack.c.b16 %v846, %v844
    %v865 = vpack.c.b16 %v847, %v845
    %v866 = vpack.c.b16 %v850, %v848
    %v867 = vpack.c.b16 %v851, %v849
    %884 = vmatprep.subr.bf16.mxu0 %v867
    %885 = vmatpush1.bf16.msra.mxu0 %v866
    %886 = vmatprep.subr.bf16.mxu0 %v865
    %887 = vmatpush1.bf16.msra.mxu0 %v864
    %888 = vmatprep.subr.bf16.mxu0 %v863
    %889 = vmatpush1.bf16.msra.mxu0 %v862
    %890 = vmatprep.subr.bf16.mxu0 %v861
    %891 = vmatpush1.bf16.msra.mxu0 %v860
    %892 = vmatprep.subr.bf16.mxu0 %v859
    %893 = vmatpush1.bf16.msra.mxu0 %v858
    %894 = vmatprep.subr.bf16.mxu0 %v857
    %895 = vmatpush1.bf16.msra.mxu0 %v856
    %896 = vmatprep.subr.bf16.mxu0 %v855
    %897 = vmatpush1.bf16.msra.mxu0 %v854
    %898 = vmatprep.subr.bf16.mxu0 %v853
    %899 = vmatpush1.bf16.msra.mxu0 %v852
    %900 = vmatprep.subr.bf16.mxu0 0
    %901 = vmatpush2.bf16.msra.mxu0 0
    %902 = vmatprep.subr.bf16.mxu0 0
    %903 = vmatpush2.bf16.msra.mxu0 0
    %904 = vmatprep.subr.bf16.mxu0 0
    %905 = vmatpush2.bf16.msra.mxu0 0
    %906 = vmatprep.subr.bf16.mxu0 0
    %907 = vmatpush2.bf16.msra.mxu0 0
    %908 = vmatprep.subr.bf16.mxu0 0
    %909 = vmatpush2.bf16.msra.mxu0 0
    %910 = vmatprep.subr.bf16.mxu0 0
    %911 = vmatpush2.bf16.msra.mxu0 0
    %912 = vmatprep.subr.bf16.mxu0 0
    %913 = vmatpush2.bf16.msra.mxu0 0
    %914 = vmatprep.subr.bf16.mxu0 0
    %915 = vmatpush2.bf16.msra.mxu0 0
    %916 = vmatprep.mubr.bf16.mxu0 0
    %917 = vmatmul.mubr.bf16.gmra.mxu0 %v785
    %v918 = vpop.f32.mrf.mxu0
    %v919 = vadd.f32 0.0, %v918
    %v920 = vpop.f32.mrf.mxu0
    %v921 = vadd.f32 0.0, %v920
    %v922 = vpop.f32.mrf.mxu0
    %v923 = vadd.f32 0.0, %v922
    %v924 = vpop.f32.mrf.mxu0
    %v925 = vadd.f32 0.0, %v924
    %926 = vmatprep.mubr.bf16.mxu0 0
    %927 = vmatmul.mubr.bf16.gmra.mxu0 %v786
    %v928 = vpop.f32.mrf.mxu0
    %v929 = vadd.f32 0.0, %v928
    %v930 = vpop.f32.mrf.mxu0
    %v931 = vadd.f32 0.0, %v930
    %v932 = vpop.f32.mrf.mxu0
    %v933 = vadd.f32 0.0, %v932
    %v934 = vpop.f32.mrf.mxu0
    %v935 = vadd.f32 0.0, %v934
    %936 = vmatprep.mubr.bf16.mxu0 0
    %937 = vmatmul.mubr.bf16.gmra.mxu0 %v787
    %v938 = vpop.f32.mrf.mxu0
    %v939 = vadd.f32 0.0, %v938
    %v940 = vpop.f32.mrf.mxu0
    %v941 = vadd.f32 0.0, %v940
    %v942 = vpop.f32.mrf.mxu0
    %v943 = vadd.f32 0.0, %v942
    %v944 = vpop.f32.mrf.mxu0
    %v945 = vadd.f32 0.0, %v944
    %946 = vdwg.mxu0
    %v947 = vld [vmem:[%s3 + $0x4] sm:$0x1]
    %v948 = vlaneseq
    %v949 = vshrl.u32 %v948, 7
    %v950 = vsub.s32 0, %v949
    %v951 = vrot.slane %v947, %v950
    %v952 = vadd.f32 %v919, %v951
    %v953 = vadd.f32 %v923, %v951
    %v954 = vadd.f32 %v929, %v951
    %v955 = vadd.f32 %v933, %v951
    %v956 = vadd.f32 %v939, %v951
    %v957 = vadd.f32 %v943, %v951
    %v958 = vld [vmem:[%s3 + $0x5] sm:$0x1]
    %v959 = vlaneseq
    %v960 = vshrl.u32 %v959, 7
    %v961 = vsub.s32 0, %v960
    %v962 = vrot.slane %v958, %v961
    %v963 = vadd.f32 %v921, %v962
    %v964 = vadd.f32 %v925, %v962
    %v965 = vadd.f32 %v931, %v962
    %v966 = vadd.f32 %v935, %v962
    %v967 = vadd.f32 %v941, %v962
    %v968 = vadd.f32 %v945, %v962
    %v969 = vpack.c.bf16 %v783, %v783
    %v970 = vld [vmem:[#allocation8 + $0x8] sm:$0xf]
    %v971 = vld [vmem:[#allocation8 + $0x2c] sm:$0xf]
    %v972 = vld [vmem:[#allocation8 + $0x50] sm:$0xf]
    %v973 = vld [vmem:[#allocation8 + $0x74] sm:$0xf]
    %v974 = vld [vmem:[#allocation8 + $0x98] sm:$0xf]
    %v975 = vld [vmem:[#allocation8 + $0xbc] sm:$0xf]
    %v976 = vld [vmem:[#allocation8 + $0xe0] sm:$0xf]
    %v977 = vld [vmem:[#allocation8 + $0x104] sm:$0xf]
    %v978 = vld [vmem:[#allocation8 + $0x128] sm:$0xf]
    %v979 = vld [vmem:[#allocation8 + $0x14c] sm:$0xf]
    %v980 = vld [vmem:[#allocation8 + $0x170] sm:$0xf]
    %v981 = vld [vmem:[#allocation8 + $0x194] sm:$0xf]
    %v982 = vld [vmem:[#allocation8 + $0x1b8] sm:$0xf]
    %v983 = vld [vmem:[#allocation8 + $0x1dc] sm:$0xf]
    %v984 = vld [vmem:[#allocation8 + $0x200] sm:$0xf]
    %v985 = vld [vmem:[#allocation8 + $0x224] sm:$0xf]
    %v986 = vld [vmem:[%s3 + $0x6] sm:$0x1]
    %v987 = vlaneseq
    %v988 = vshrl.u32 %v987, 7
    %v989 = vsub.s32 0, %v988
    %v990 = vrot.slane %v986, %v989
    %v1007 = vunpack.c.l.b16 %v970
    %v1008 = vunpack.c.l.b16 %v971
    %v1009 = vunpack.c.l.b16 %v972
    %v1010 = vunpack.c.l.b16 %v973
    %v1011 = vunpack.c.l.b16 %v974
    %v1012 = vunpack.c.l.b16 %v975
    %v1013 = vunpack.c.l.b16 %v976
    %v1014 = vunpack.c.l.b16 %v977
    %v1015 = vunpack.c.l.b16 %v978
    %v1016 = vunpack.c.l.b16 %v979
    %v1017 = vunpack.c.l.b16 %v980
    %v1018 = vunpack.c.l.b16 %v981
    %v1019 = vunpack.c.l.b16 %v982
    %v1020 = vunpack.c.l.b16 %v983
    %v1021 = vunpack.c.l.b16 %v984
    %v1022 = vunpack.c.l.b16 %v985
    %v1023 = vpack.c.b16 %v1008, %v1007
    %v1024 = vpack.c.b16 %v1010, %v1009
    %v1025 = vpack.c.b16 %v1012, %v1011
    %v1026 = vpack.c.b16 %v1014, %v1013
    %v1027 = vpack.c.b16 %v1016, %v1015
    %v1028 = vpack.c.b16 %v1018, %v1017
    %v1029 = vpack.c.b16 %v1020, %v1019
    %v1030 = vpack.c.b16 %v1022, %v1021
    %1039 = vmatprep.subr.bf16.mxu0 0
    %1040 = vmatpush1.bf16.msra.mxu0 %v1030
    %1041 = vmatprep.subr.bf16.mxu0 0
    %1042 = vmatpush1.bf16.msra.mxu0 %v1029
    %1043 = vmatprep.subr.bf16.mxu0 0
    %1044 = vmatpush1.bf16.msra.mxu0 %v1028
    %1045 = vmatprep.subr.bf16.mxu0 0
    %1046 = vmatpush1.bf16.msra.mxu0 %v1027
    %1047 = vmatprep.subr.bf16.mxu0 0
    %1048 = vmatpush1.bf16.msra.mxu0 %v1026
    %1049 = vmatprep.subr.bf16.mxu0 0
    %1050 = vmatpush1.bf16.msra.mxu0 %v1025
    %1051 = vmatprep.subr.bf16.mxu0 0
    %1052 = vmatpush1.bf16.msra.mxu0 %v1024
    %1053 = vmatprep.subr.bf16.mxu0 0
    %1054 = vmatpush1.bf16.msra.mxu0 %v1023
    %1055 = vmatprep.subr.bf16.mxu0 0
    %1056 = vmatpush2.bf16.msra.mxu0 0
    %1057 = vmatprep.subr.bf16.mxu0 0
    %1058 = vmatpush2.bf16.msra.mxu0 0
    %1059 = vmatprep.subr.bf16.mxu0 0
    %1060 = vmatpush2.bf16.msra.mxu0 0
    %1061 = vmatprep.subr.bf16.mxu0 0
    %1062 = vmatpush2.bf16.msra.mxu0 0
    %1063 = vmatprep.subr.bf16.mxu0 0
    %1064 = vmatpush2.bf16.msra.mxu0 0
    %1065 = vmatprep.subr.bf16.mxu0 0
    %1066 = vmatpush2.bf16.msra.mxu0 0
    %1067 = vmatprep.subr.bf16.mxu0 0
    %1068 = vmatpush2.bf16.msra.mxu0 0
    %1069 = vmatprep.subr.bf16.mxu0 0
    %1070 = vmatpush2.bf16.msra.mxu0 0
    %1071 = vmatprep.mubr.bf16.mxu0 0
    %1072 = vmatmul.mubr.bf16.gmra.mxu0 %v969
    %v1073 = vpop.f32.mrf.mxu0
    %v1074 = vadd.f32 %v990, %v1073
    %v1075 = vpop.f32.mrf.mxu0
    %v1076 = vpop.f32.mrf.mxu0
    %v1077 = vpop.f32.mrf.mxu0
    %1078 = vdwg.mxu0
    %v1079 = vpack.c.bf16 %v1074, %v1074
    %v1080 = vpack.c.bf16 %v953, %v952
    %v1081 = vpack.c.bf16 %v955, %v954
    %v1082 = vpack.c.bf16 %v957, %v956
    %v1083 = vld [vmem:[%s3 + $0x10] sm:$0xff]
    %1084 = vmatprep.subr.bf16.mxu0 0
    %1085 = vmatpush1.bf16.xpose.msra.mxu0 0
    %1086 = vmatprep.subr.bf16.mxu0 0
    %1087 = vmatpush1.bf16.xpose.msra.mxu0 0
    %1088 = vmatprep.subr.bf16.mxu0 0
    %1089 = vmatpush1.bf16.xpose.msra.mxu0 0
    %1090 = vmatprep.subr.bf16.mxu0 0
    %1091 = vmatpush1.bf16.xpose.msra.mxu0 0
    %1092 = vmatprep.subr.bf16.mxu0 0
    %1093 = vmatpush1.bf16.xpose.msra.mxu0 0
    %1094 = vmatprep.subr.bf16.mxu0 0
    %1095 = vmatpush1.bf16.xpose.msra.mxu0 %v1082
    %1096 = vmatprep.subr.bf16.mxu0 0
    %1097 = vmatpush1.bf16.xpose.msra.mxu0 %v1081
    %1098 = vmatprep.subr.bf16.mxu0 0
    %1099 = vmatpush1.bf16.xpose.msra.mxu0 %v1080
    %1100 = vmatprep.subr.bf16.mxu0 0
    %1101 = vmatpush2.bf16.xpose.msra.mxu0 0
    %1102 = vmatprep.subr.bf16.mxu0 0
    %1103 = vmatpush2.bf16.xpose.msra.mxu0 0
    %1104 = vmatprep.subr.bf16.mxu0 0
    %1105 = vmatpush2.bf16.xpose.msra.mxu0 0
    %1106 = vmatprep.subr.bf16.mxu0 0
    %1107 = vmatpush2.bf16.xpose.msra.mxu0 0
    %1108 = vmatprep.subr.bf16.mxu0 0
    %1109 = vmatpush2.bf16.xpose.msra.mxu0 0
    %1110 = vmatprep.subr.bf16.mxu0 0
    %1111 = vmatpush2.bf16.xpose.msra.mxu0 0
    %1112 = vmatprep.subr.bf16.mxu0 0
    %1113 = vmatpush2.bf16.xpose.msra.mxu0 0
    %1114 = vmatprep.subr.bf16.mxu0 0
    %1115 = vmatpush2.bf16.xpose.msra.mxu0 0
    %1116 = vmatprep.mubr.bf16.mxu0 0
    %1117 = vmatmul.mubr.bf16.gmra.mxu0 %v1079
    %v1118 = vpop.f32.mrf.mxu0
    %v1119 = vadd.f32 %v1083, %v1118
    %v1120 = vpop.f32.mrf.mxu0
    %v1121 = vpop.f32.mrf.mxu0
    %v1122 = vpop.f32.mrf.mxu0
    %1123 = vdwg.mxu0
    %vm1124 = vcmask 392192
    %v1125 = vsel %vm1124, %v1119, -inf
    %1126 = vmax.xlane.f32.xlu0 %v1125
    %v1127 = vpop.xlane.xlu0 %1126
    %v1128 = vsub.f32 %v1119, %v1127
    %v1129 = vmul.f32 %v1128, 1.442695
    %v1130 = vpow.pop %v1129
    %v1131 = vsel %vm1124, %v1130, 0.0
    %1132 = vadd.xlane.f32.xlu0 %v1131
    %v1133 = vpop.xlane.xlu0 %1132
    %v1134 = vrcp.pop %v1133
    %v1135 = vmul.f32 %v1130, %v1134
    %v1136 = vpack.c.bf16 %v1135, %v1135
    %v1137 = vpack.c.bf16 %v964, %v963
    %v1138 = vpack.c.bf16 %v966, %v965
    %v1139 = vpack.c.bf16 %v968, %v967
    %v1141 = vsel %vm1124, %v1136, 0
    %1143 = vmatprep.subr.bf16.mxu0 0
    %1144 = vmatpush1.bf16.msra.mxu0 0
    %1145 = vmatprep.subr.bf16.mxu0 0
    %1146 = vmatpush1.bf16.msra.mxu0 0
    %1147 = vmatprep.subr.bf16.mxu0 0
    %1148 = vmatpush1.bf16.msra.mxu0 0
    %1149 = vmatprep.subr.bf16.mxu0 0
    %1150 = vmatpush1.bf16.msra.mxu0 0
    %1151 = vmatprep.subr.bf16.mxu0 0
    %1152 = vmatpush1.bf16.msra.mxu0 0
    %1153 = vmatprep.subr.bf16.mxu0 0
    %1154 = vmatpush1.bf16.msra.mxu0 %v1139
    %1155 = vmatprep.subr.bf16.mxu0 0
    %1156 = vmatpush1.bf16.msra.mxu0 %v1138
    %1157 = vmatprep.subr.bf16.mxu0 0
    %1158 = vmatpush1.bf16.msra.mxu0 %v1137
    %1159 = vmatprep.subr.bf16.mxu0 0
    %1160 = vmatpush2.bf16.msra.mxu0 0
    %1161 = vmatprep.subr.bf16.mxu0 0
    %1162 = vmatpush2.bf16.msra.mxu0 0
    %1163 = vmatprep.subr.bf16.mxu0 0
    %1164 = vmatpush2.bf16.msra.mxu0 0
    %1165 = vmatprep.subr.bf16.mxu0 0
    %1166 = vmatpush2.bf16.msra.mxu0 0
    %1167 = vmatprep.subr.bf16.mxu0 0
    %1168 = vmatpush2.bf16.msra.mxu0 0
    %1169 = vmatprep.subr.bf16.mxu0 0
    %1170 = vmatpush2.bf16.msra.mxu0 0
    %1171 = vmatprep.subr.bf16.mxu0 0
    %1172 = vmatpush2.bf16.msra.mxu0 0
    %1173 = vmatprep.subr.bf16.mxu0 0
    %1174 = vmatpush2.bf16.msra.mxu0 0
    %1175 = vmatprep.mubr.bf16.mxu0 0
    %1176 = vmatmul.mubr.bf16.gmra.mxu0 %v1141
    %v1177 = vpop.f32.mrf.mxu0
    %v1178 = vadd.f32 0.0, %v1177
    %v1179 = vpop.f32.mrf.mxu0
    %v1180 = vpop.f32.mrf.mxu0
    %v1181 = vpop.f32.mrf.mxu0
    %1182 = vdwg.mxu0
    %v1183 = vpack.c.bf16 %v1178, %v1178
    %v1184 = vld [vmem:[#allocation8 + $0xc] sm:$0xf]
    %v1185 = vld [vmem:[#allocation8 + $0x30] sm:$0xf]
    %v1186 = vld [vmem:[#allocation8 + $0x54] sm:$0xf]
    %v1187 = vld [vmem:[#allocation8 + $0x78] sm:$0xf]
    %v1188 = vld [vmem:[#allocation8 + $0x9c] sm:$0xf]
    %v1189 = vld [vmem:[#allocation8 + $0xc0] sm:$0xf]
    %v1190 = vld [vmem:[#allocation8 + $0xe4] sm:$0xf]
    %v1191 = vld [vmem:[#allocation8 + $0x108] sm:$0xf]
    %v1192 = vld [vmem:[#allocation8 + $0x12c] sm:$0xf]
    %v1193 = vld [vmem:[#allocation8 + $0x150] sm:$0xf]
    %v1194 = vld [vmem:[#allocation8 + $0x174] sm:$0xf]
    %v1195 = vld [vmem:[#allocation8 + $0x198] sm:$0xf]
    %v1196 = vld [vmem:[#allocation8 + $0x1bc] sm:$0xf]
    %v1197 = vld [vmem:[#allocation8 + $0x1e0] sm:$0xf]
    %v1198 = vld [vmem:[#allocation8 + $0x204] sm:$0xf]
    %v1199 = vld [vmem:[#allocation8 + $0x228] sm:$0xf]
    %v1216 = vunpack.c.l.b16 %v1184
    %v1217 = vunpack.c.l.b16 %v1185
    %v1218 = vunpack.c.l.b16 %v1186
    %v1219 = vunpack.c.l.b16 %v1187
    %v1220 = vunpack.c.l.b16 %v1188
    %v1221 = vunpack.c.l.b16 %v1189
    %v1222 = vunpack.c.l.b16 %v1190
    %v1223 = vunpack.c.l.b16 %v1191
    %v1224 = vunpack.c.l.b16 %v1192
    %v1225 = vunpack.c.l.b16 %v1193
    %v1226 = vunpack.c.l.b16 %v1194
    %v1227 = vunpack.c.l.b16 %v1195
    %v1228 = vunpack.c.l.b16 %v1196
    %v1229 = vunpack.c.l.b16 %v1197
    %v1230 = vunpack.c.l.b16 %v1198
    %v1231 = vunpack.c.l.b16 %v1199
    %v1232 = vpack.c.b16 %v1217, %v1216
    %v1233 = vpack.c.b16 %v1219, %v1218
    %v1234 = vpack.c.b16 %v1221, %v1220
    %v1235 = vpack.c.b16 %v1223, %v1222
    %v1236 = vpack.c.b16 %v1225, %v1224
    %v1237 = vpack.c.b16 %v1227, %v1226
    %v1238 = vpack.c.b16 %v1229, %v1228
    %v1239 = vpack.c.b16 %v1231, %v1230
    %1248 = vmatprep.subr.bf16.mxu0 0
    %1249 = vmatpush1.bf16.msra.mxu0 %v1239
    %1250 = vmatprep.subr.bf16.mxu0 0
    %1251 = vmatpush1.bf16.msra.mxu0 %v1238
    %1252 = vmatprep.subr.bf16.mxu0 0
    %1253 = vmatpush1.bf16.msra.mxu0 %v1237
    %1254 = vmatprep.subr.bf16.mxu0 0
    %1255 = vmatpush1.bf16.msra.mxu0 %v1236
    %1256 = vmatprep.subr.bf16.mxu0 0
    %1257 = vmatpush1.bf16.msra.mxu0 %v1235
    %1258 = vmatprep.subr.bf16.mxu0 0
    %1259 = vmatpush1.bf16.msra.mxu0 %v1234
    %1260 = vmatprep.subr.bf16.mxu0 0
    %1261 = vmatpush1.bf16.msra.mxu0 %v1233
    %1262 = vmatprep.subr.bf16.mxu0 0
    %1263 = vmatpush1.bf16.msra.mxu0 %v1232
    %1264 = vmatprep.subr.bf16.mxu0 0
    %1265 = vmatpush2.bf16.msra.mxu0 0
    %1266 = vmatprep.subr.bf16.mxu0 0
    %1267 = vmatpush2.bf16.msra.mxu0 0
    %1268 = vmatprep.subr.bf16.mxu0 0
    %1269 = vmatpush2.bf16.msra.mxu0 0
    %1270 = vmatprep.subr.bf16.mxu0 0
    %1271 = vmatpush2.bf16.msra.mxu0 0
    %1272 = vmatprep.subr.bf16.mxu0 0
    %1273 = vmatpush2.bf16.msra.mxu0 0
    %1274 = vmatprep.subr.bf16.mxu0 0
    %1275 = vmatpush2.bf16.msra.mxu0 0
    %1276 = vmatprep.subr.bf16.mxu0 0
    %1277 = vmatpush2.bf16.msra.mxu0 0
    %1278 = vmatprep.subr.bf16.mxu0 0
    %1279 = vmatpush2.bf16.msra.mxu0 0
    %1280 = vmatprep.mubr.bf16.mxu0 0
    %1281 = vmatmul.mubr.bf16.gmra.mxu0 %v1183
    %v1282 = vpop.f32.mrf.mxu0
    %v1283 = vadd.f32 0.0, %v1282
    %v1284 = vpop.f32.mrf.mxu0
    %v1285 = vpop.f32.mrf.mxu0
    %v1286 = vpop.f32.mrf.mxu0
    %1287 = vdwg.mxu0
    %v1288 = vadd.f32 %v695, %v1283
    %v1289 = vld [vmem:[%s3 + $0x7] sm:$0x1]
    %v1290 = vlaneseq
    %v1291 = vshrl.u32 %v1290, 7
    %v1292 = vsub.s32 0, %v1291
    %v1293 = vrot.slane %v1289, %v1292
    %v1294 = vadd.f32 %v1288, %v1293
    %v1295 = vld [vmem:[%s3 + $0x8] sm:$0x1]
    %v1296 = vld [vmem:[%s3 + $0x9] sm:$0x1]
    %1297 = vadd.xlane.f32.xlu0 %v1294
    %v1298 = vpop.xlane.xlu0 %1297
    %v1299 = vmul.f32 %v1298, %v622
    %v1300 = vsub.f32 %v1294, %v1299
    %v1301 = vmul.f32 %v1300, %v1300
    %1302 = vadd.xlane.f32.xlu0 %v1301
    %v1303 = vpop.xlane.xlu0 %1302
    %v1304 = vmul.f32 %v1303, %v622
    %v1305 = vadd.f32 %v1304, 1e-05
    %v1306 = vrsqrt.pop %v1305
    %v1307 = vmul.f32 %v1300, %v1306
    %v1308 = vlaneseq
    %v1309 = vshrl.u32 %v1308, 7
    %v1310 = vsub.s32 0, %v1309
    %v1311 = vrot.slane %v1295, %v1310
    %v1312 = vmul.f32 %v1307, %v1311
    %v1313 = vlaneseq
    %v1314 = vshrl.u32 %v1313, 7
    %v1315 = vsub.s32 0, %v1314
    %v1316 = vrot.slane %v1296, %v1315
    %v1317 = vadd.f32 %v1312, %v1316
    %v1318 = vpack.c.bf16 %v1317, %v1317
    %v1319 = vld [vmem:[#allocation8 + $0x10] sm:$0xff]
    %v1320 = vld [vmem:[#allocation8 + $0x18] sm:$0xff]
    %v1321 = vld [vmem:[#allocation8 + $0x34] sm:$0xff]
    %v1322 = vld [vmem:[#allocation8 + $0x3c] sm:$0xff]
    %v1323 = vld [vmem:[#allocation8 + $0x58] sm:$0xff]
    %v1324 = vld [vmem:[#allocation8 + $0x60] sm:$0xff]
    %v1325 = vld [vmem:[#allocation8 + $0x7c] sm:$0xff]
    %v1326 = vld [vmem:[#allocation8 + $0x84] sm:$0xff]
    %v1327 = vld [vmem:[#allocation8 + $0xa0] sm:$0xff]
    %v1328 = vld [vmem:[#allocation8 + $0xa8] sm:$0xff]
    %v1329 = vld [vmem:[#allocation8 + $0xc4] sm:$0xff]
    %v1330 = vld [vmem:[#allocation8 + $0xcc] sm:$0xff]
    %v1331 = vld [vmem:[#allocation8 + $0xe8] sm:$0xff]
    %v1332 = vld [vmem:[#allocation8 + $0xf0] sm:$0xff]
    %v1333 = vld [vmem:[#allocation8 + $0x10c] sm:$0xff]
    %v1334 = vld [vmem:[#allocation8 + $0x114] sm:$0xff]
    %v1335 = vld [vmem:[#allocation8 + $0x130] sm:$0xff]
    %v1336 = vld [vmem:[#allocation8 + $0x138] sm:$0xff]
    %v1337 = vld [vmem:[#allocation8 + $0x154] sm:$0xff]
    %v1338 = vld [vmem:[#allocation8 + $0x15c] sm:$0xff]
    %v1339 = vld [vmem:[#allocation8 + $0x178] sm:$0xff]
    %v1340 = vld [vmem:[#allocation8 + $0x180] sm:$0xff]
    %v1341 = vld [vmem:[#allocation8 + $0x19c] sm:$0xff]
    %v1342 = vld [vmem:[#allocation8 + $0x1a4] sm:$0xff]
    %v1343 = vld [vmem:[#allocation8 + $0x1c0] sm:$0xff]
    %v1344 = vld [vmem:[#allocation8 + $0x1c8] sm:$0xff]
    %v1345 = vld [vmem:[#allocation8 + $0x1e4] sm:$0xff]
    %v1346 = vld [vmem:[#allocation8 + $0x1ec] sm:$0xff]
    %v1347 = vld [vmem:[#allocation8 + $0x208] sm:$0xff]
    %v1348 = vld [vmem:[#allocation8 + $0x210] sm:$0xff]
    %v1349 = vld [vmem:[#allocation8 + $0x22c] sm:$0xff]
    %v1350 = vld [vmem:[#allocation8 + $0x234] sm:$0xff]
    %s1351 = scalar_lea.vmem %s4, 1
    %v1352 = vld [vmem:[%s1351] ss:$2 sm:$0xf]
    %v1354 = vlaneseq
    %v1355 = vshrl.u32 %v1354, 7
    %v1356 = vsub.s32 0, %v1355
    %v1357 = vrot.slane %v1352, %v1356
    %v1358 = vlaneseq
    %v1359 = vshrl.u32 %v1358, 7
    %v1360 = vsub.s32 1, %v1359
    %v1361 = vrot.slane %v1352, %v1360
    %v1362 = vlaneseq
    %v1363 = vshrl.u32 %v1362, 7
    %v1364 = vsub.s32 2, %v1363
    %v1365 = vrot.slane %v1352, %v1364
    %v1366 = vlaneseq
    %v1367 = vshrl.u32 %v1366, 7
    %v1368 = vsub.s32 3, %v1367
    %v1369 = vrot.slane %v1352, %v1368
    %v1406 = vunpack.c.l.b16 %v1319
    %v1407 = vunpack.c.h.b16 %v1319
    %v1408 = vunpack.c.l.b16 %v1320
    %v1409 = vunpack.c.h.b16 %v1320
    %v1410 = vunpack.c.l.b16 %v1321
    %v1411 = vunpack.c.h.b16 %v1321
    %v1412 = vunpack.c.l.b16 %v1322
    %v1413 = vunpack.c.h.b16 %v1322
    %v1414 = vunpack.c.l.b16 %v1323
    %v1415 = vunpack.c.h.b16 %v1323
    %v1416 = vunpack.c.l.b16 %v1324
    %v1417 = vunpack.c.h.b16 %v1324
    %v1418 = vunpack.c.l.b16 %v1325
    %v1419 = vunpack.c.h.b16 %v1325
    %v1420 = vunpack.c.l.b16 %v1326
    %v1421 = vunpack.c.h.b16 %v1326
    %v1422 = vunpack.c.l.b16 %v1327
    %v1423 = vunpack.c.h.b16 %v1327
    %v1424 = vunpack.c.l.b16 %v1328
    %v1425 = vunpack.c.h.b16 %v1328
    %v1426 = vunpack.c.l.b16 %v1329
    %v1427 = vunpack.c.h.b16 %v1329
    %v1428 = vunpack.c.l.b16 %v1330
    %v1429 = vunpack.c.h.b16 %v1330
    %v1430 = vunpack.c.l.b16 %v1331
    %v1431 = vunpack.c.h.b16 %v1331
    %v1432 = vunpack.c.l.b16 %v1332
    %v1433 = vunpack.c.h.b16 %v1332
    %v1434 = vunpack.c.l.b16 %v1333
    %v1435 = vunpack.c.h.b16 %v1333
    %v1436 = vunpack.c.l.b16 %v1334
    %v1437 = vunpack.c.h.b16 %v1334
    %v1438 = vunpack.c.l.b16 %v1335
    %v1439 = vunpack.c.h.b16 %v1335
    %v1440 = vunpack.c.l.b16 %v1336
    %v1441 = vunpack.c.h.b16 %v1336
    %v1442 = vunpack.c.l.b16 %v1337
    %v1443 = vunpack.c.h.b16 %v1337
    %v1444 = vunpack.c.l.b16 %v1338
    %v1445 = vunpack.c.h.b16 %v1338
    %v1446 = vunpack.c.l.b16 %v1339
    %v1447 = vunpack.c.h.b16 %v1339
    %v1448 = vunpack.c.l.b16 %v1340
    %v1449 = vunpack.c.h.b16 %v1340
    %v1450 = vunpack.c.l.b16 %v1341
    %v1451 = vunpack.c.h.b16 %v1341
    %v1452 = vunpack.c.l.b16 %v1342
    %v1453 = vunpack.c.h.b16 %v1342
    %v1454 = vunpack.c.l.b16 %v1343
    %v1455 = vunpack.c.h.b16 %v1343
    %v1456 = vunpack.c.l.b16 %v1344
    %v1457 = vunpack.c.h.b16 %v1344
    %v1458 = vunpack.c.l.b16 %v1345
    %v1459 = vunpack.c.h.b16 %v1345
    %v1460 = vunpack.c.l.b16 %v1346
    %v1461 = vunpack.c.h.b16 %v1346
    %v1462 = vunpack.c.l.b16 %v1347
    %v1463 = vunpack.c.h.b16 %v1347
    %v1464 = vunpack.c.l.b16 %v1348
    %v1465 = vunpack.c.h.b16 %v1348
    %v1466 = vunpack.c.l.b16 %v1349
    %v1467 = vunpack.c.h.b16 %v1349
    %v1468 = vunpack.c.l.b16 %v1350
    %v1469 = vunpack.c.h.b16 %v1350
    %v1470 = vpack.c.b16 %v1410, %v1406
    %v1471 = vpack.c.b16 %v1411, %v1407
    %v1472 = vpack.c.b16 %v1412, %v1408
    %v1473 = vpack.c.b16 %v1413, %v1409
    %v1474 = vpack.c.b16 %v1418, %v1414
    %v1475 = vpack.c.b16 %v1419, %v1415
    %v1476 = vpack.c.b16 %v1420, %v1416
    %v1477 = vpack.c.b16 %v1421, %v1417
    %v1478 = vpack.c.b16 %v1426, %v1422
    %v1479 = vpack.c.b16 %v1427, %v1423
    %v1480 = vpack.c.b16 %v1428, %v1424
    %v1481 = vpack.c.b16 %v1429, %v1425
    %v1482 = vpack.c.b16 %v1434, %v1430
    %v1483 = vpack.c.b16 %v1435, %v1431
    %v1484 = vpack.c.b16 %v1436, %v1432
    %v1485 = vpack.c.b16 %v1437, %v1433
    %v1486 = vpack.c.b16 %v1442, %v1438
    %v1487 = vpack.c.b16 %v1443, %v1439
    %v1488 = vpack.c.b16 %v1444, %v1440
    %v1489 = vpack.c.b16 %v1445, %v1441
    %v1490 = vpack.c.b16 %v1450, %v1446
    %v1491 = vpack.c.b16 %v1451, %v1447
    %v1492 = vpack.c.b16 %v1452, %v1448
    %v1493 = vpack.c.b16 %v1453, %v1449
    %v1494 = vpack.c.b16 %v1458, %v1454
    %v1495 = vpack.c.b16 %v1459, %v1455
    %v1496 = vpack.c.b16 %v1460, %v1456
    %v1497 = vpack.c.b16 %v1461, %v1457
    %v1498 = vpack.c.b16 %v1466, %v1462
    %v1499 = vpack.c.b16 %v1467, %v1463
    %v1500 = vpack.c.b16 %v1468, %v1464
    %v1501 = vpack.c.b16 %v1469, %v1465
    %1534 = vmatprep.subr.bf16.mxu0 %v1499
    %1535 = vmatpush1.bf16.msra.mxu0 %v1498
    %1536 = vmatprep.subr.bf16.mxu0 %v1495
    %1537 = vmatpush1.bf16.msra.mxu0 %v1494
    %1538 = vmatprep.subr.bf16.mxu0 %v1491
    %1539 = vmatpush1.bf16.msra.mxu0 %v1490
    %1540 = vmatprep.subr.bf16.mxu0 %v1487
    %1541 = vmatpush1.bf16.msra.mxu0 %v1486
    %1542 = vmatprep.subr.bf16.mxu0 %v1483
    %1543 = vmatpush1.bf16.msra.mxu0 %v1482
    %1544 = vmatprep.subr.bf16.mxu0 %v1479
    %1545 = vmatpush1.bf16.msra.mxu0 %v1478
    %1546 = vmatprep.subr.bf16.mxu0 %v1475
    %1547 = vmatpush1.bf16.msra.mxu0 %v1474
    %1548 = vmatprep.subr.bf16.mxu0 %v1471
    %1549 = vmatpush1.bf16.msra.mxu0 %v1470
    %1550 = vmatprep.subr.bf16.mxu0 0
    %1551 = vmatpush2.bf16.msra.mxu0 0
    %1552 = vmatprep.subr.bf16.mxu0 0
    %1553 = vmatpush2.bf16.msra.mxu0 0
    %1554 = vmatprep.subr.bf16.mxu0 0
    %1555 = vmatpush2.bf16.msra.mxu0 0
    %1556 = vmatprep.subr.bf16.mxu0 0
    %1557 = vmatpush2.bf16.msra.mxu0 0
    %1558 = vmatprep.subr.bf16.mxu0 0
    %1559 = vmatpush2.bf16.msra.mxu0 0
    %1560 = vmatprep.subr.bf16.mxu0 0
    %1561 = vmatpush2.bf16.msra.mxu0 0
    %1562 = vmatprep.subr.bf16.mxu0 0
    %1563 = vmatpush2.bf16.msra.mxu0 0
    %1564 = vmatprep.subr.bf16.mxu0 0
    %1565 = vmatpush2.bf16.msra.mxu0 0
    %1566 = vmatprep.mubr.bf16.mxu0 0
    %1567 = vmatmul.mubr.bf16.gmra.mxu0 %v1318
    %v1568 = vpop.f32.mrf.mxu0
    %v1569 = vadd.f32 %v1357, %v1568
    %v1570 = vpop.f32.mrf.mxu0
    %v1571 = vadd.f32 %v1361, %v1570
    %v1572 = vpop.f32.mrf.mxu0
    %v1573 = vpop.f32.mrf.mxu0
    %1574 = vdwg.mxu0
    %1575 = vmatprep.subr.bf16.mxu0 %v1501
    %1576 = vmatpush1.bf16.msra.mxu0 %v1500
    %1577 = vmatprep.subr.bf16.mxu0 %v1497
    %1578 = vmatpush1.bf16.msra.mxu0 %v1496
    %1579 = vmatprep.subr.bf16.mxu0 %v1493
    %1580 = vmatpush1.bf16.msra.mxu0 %v1492
    %1581 = vmatprep.subr.bf16.mxu0 %v1489
    %1582 = vmatpush1.bf16.msra.mxu0 %v1488
    %1583 = vmatprep.subr.bf16.mxu0 %v1485
    %1584 = vmatpush1.bf16.msra.mxu0 %v1484
    %1585 = vmatprep.subr.bf16.mxu0 %v1481
    %1586 = vmatpush1.bf16.msra.mxu0 %v1480
    %1587 = vmatprep.subr.bf16.mxu0 %v1477
    %1588 = vmatpush1.bf16.msra.mxu0 %v1476
    %1589 = vmatprep.subr.bf16.mxu0 %v1473
    %1590 = vmatpush1.bf16.msra.mxu0 %v1472
    %1591 = vmatprep.subr.bf16.mxu0 0
    %1592 = vmatpush2.bf16.msra.mxu0 0
    %1593 = vmatprep.subr.bf16.mxu0 0
    %1594 = vmatpush2.bf16.msra.mxu0 0
    %1595 = vmatprep.subr.bf16.mxu0 0
    %1596 = vmatpush2.bf16.msra.mxu0 0
    %1597 = vmatprep.subr.bf16.mxu0 0
    %1598 = vmatpush2.bf16.msra.mxu0 0
    %1599 = vmatprep.subr.bf16.mxu0 0
    %1600 = vmatpush2.bf16.msra.mxu0 0
    %1601 = vmatprep.subr.bf16.mxu0 0
    %1602 = vmatpush2.bf16.msra.mxu0 0
    %1603 = vmatprep.subr.bf16.mxu0 0
    %1604 = vmatpush2.bf16.msra.mxu0 0
    %1605 = vmatprep.subr.bf16.mxu0 0
    %1606 = vmatpush2.bf16.msra.mxu0 0
    %1607 = vmatprep.mubr.bf16.mxu0 0
    %1608 = vmatmul.mubr.bf16.gmra.mxu0 %v1318
    %v1609 = vpop.f32.mrf.mxu0
    %v1610 = vadd.f32 %v1365, %v1609
    %v1611 = vpop.f32.mrf.mxu0
    %v1612 = vadd.f32 %v1369, %v1611
    %v1613 = vpop.f32.mrf.mxu0
    %v1614 = vpop.f32.mrf.mxu0
    %1615 = vdwg.mxu0
    %v1616 = vmul.f32 %v1569, 0.5
    %v1617 = vmul.f32 %v1571, 0.5
    %v1618 = vmul.f32 %v1610, 0.5
    %v1619 = vmul.f32 %v1612, 0.5
    %v1620 = vmul.f32 %v1569, 0.044715
    %v1621 = vmul.f32 %v1571, 0.044715
    %v1622 = vmul.f32 %v1610, 0.044715
    %v1623 = vmul.f32 %v1612, 0.044715
    %v1624 = vmul.f32 %v1620, %v1569
    %v1625 = vmul.f32 %v1621, %v1571
    %v1626 = vmul.f32 %v1622, %v1610
    %v1627 = vmul.f32 %v1623, %v1612
    %v1628 = vmul.f32 %v1624, %v1569
    %v1629 = vmul.f32 %v1625, %v1571
    %v1630 = vmul.f32 %v1626, %v1610
    %v1631 = vmul.f32 %v1627, %v1612
    %v1632 = vadd.f32 %v1569, %v1628
    %v1633 = vadd.f32 %v1571, %v1629
    %v1634 = vadd.f32 %v1610, %v1630
    %v1635 = vadd.f32 %v1612, %v1631
    %v1636 = vmul.f32 %v1632, 0.7978846
    %v1637 = vmul.f32 %v1633, 0.7978846
    %v1638 = vmul.f32 %v1634, 0.7978846
    %v1639 = vmul.f32 %v1635, 0.7978846
    %v1640 = vtanh.pop %v1636
    %v1641 = vtanh.pop %v1637
    %v1642 = vtanh.pop %v1638
    %v1643 = vtanh.pop %v1639
    %v1644 = vadd.f32 %v1640, 1.0
    %v1645 = vadd.f32 %v1641, 1.0
    %v1646 = vadd.f32 %v1642, 1.0
    %v1647 = vadd.f32 %v1643, 1.0
    %v1648 = vmul.f32 %v1616, %v1644
    %v1649 = vmul.f32 %v1617, %v1645
    %v1650 = vmul.f32 %v1618, %v1646
    %v1651 = vmul.f32 %v1619, %v1647
    %v1652 = vpack.c.bf16 %v1648, %v1648
    %v1653 = vpack.c.bf16 %v1649, %v1649
    %v1654 = vpack.c.bf16 %v1650, %v1650
    %v1655 = vpack.c.bf16 %v1651, %v1651
    %v1656 = vld [vmem:[#allocation9] sm:$0xf]
    %v1657 = vld [vmem:[#allocation9 + $0x4] sm:$0xf]
    %v1658 = vld [vmem:[#allocation9 + $0x8] sm:$0xf]
    %v1659 = vld [vmem:[#allocation9 + $0xc] sm:$0xf]
    %v1660 = vld [vmem:[#allocation9 + $0x10] sm:$0xf]
    %v1661 = vld [vmem:[#allocation9 + $0x14] sm:$0xf]
    %v1662 = vld [vmem:[#allocation9 + $0x18] sm:$0xf]
    %v1663 = vld [vmem:[#allocation9 + $0x1c] sm:$0xf]
    %v1664 = vld [vmem:[#allocation9 + $0x20] sm:$0xf]
    %v1665 = vld [vmem:[#allocation9 + $0x24] sm:$0xf]
    %v1666 = vld [vmem:[#allocation9 + $0x28] sm:$0xf]
    %v1667 = vld [vmem:[#allocation9 + $0x2c] sm:$0xf]
    %v1668 = vld [vmem:[#allocation9 + $0x30] sm:$0xf]
    %v1669 = vld [vmem:[#allocation9 + $0x34] sm:$0xf]
    %v1670 = vld [vmem:[#allocation9 + $0x38] sm:$0xf]
    %v1671 = vld [vmem:[#allocation9 + $0x3c] sm:$0xf]
    %v1672 = vld [vmem:[#allocation9 + $0x40] sm:$0xf]
    %v1673 = vld [vmem:[#allocation9 + $0x44] sm:$0xf]
    %v1674 = vld [vmem:[#allocation9 + $0x48] sm:$0xf]
    %v1675 = vld [vmem:[#allocation9 + $0x4c] sm:$0xf]
    %v1676 = vld [vmem:[#allocation9 + $0x50] sm:$0xf]
    %v1677 = vld [vmem:[#allocation9 + $0x54] sm:$0xf]
    %v1678 = vld [vmem:[#allocation9 + $0x58] sm:$0xf]
    %v1679 = vld [vmem:[#allocation9 + $0x5c] sm:$0xf]
    %v1680 = vld [vmem:[#allocation9 + $0x60] sm:$0xf]
    %v1681 = vld [vmem:[#allocation9 + $0x64] sm:$0xf]
    %v1682 = vld [vmem:[#allocation9 + $0x68] sm:$0xf]
    %v1683 = vld [vmem:[#allocation9 + $0x6c] sm:$0xf]
    %v1684 = vld [vmem:[#allocation9 + $0x70] sm:$0xf]
    %v1685 = vld [vmem:[#allocation9 + $0x74] sm:$0xf]
    %v1686 = vld [vmem:[#allocation9 + $0x78] sm:$0xf]
    %v1687 = vld [vmem:[#allocation9 + $0x7c] sm:$0xf]
    %v1688 = vld [vmem:[#allocation9 + $0x80] sm:$0xf]
    %v1689 = vld [vmem:[#allocation9 + $0x84] sm:$0xf]
    %v1690 = vld [vmem:[#allocation9 + $0x88] sm:$0xf]
    %v1691 = vld [vmem:[#allocation9 + $0x8c] sm:$0xf]
    %v1692 = vld [vmem:[#allocation9 + $0x90] sm:$0xf]
    %v1693 = vld [vmem:[#allocation9 + $0x94] sm:$0xf]
    %v1694 = vld [vmem:[#allocation9 + $0x98] sm:$0xf]
    %v1695 = vld [vmem:[#allocation9 + $0x9c] sm:$0xf]
    %v1696 = vld [vmem:[#allocation9 + $0xa0] sm:$0xf]
    %v1697 = vld [vmem:[#allocation9 + $0xa4] sm:$0xf]
    %v1698 = vld [vmem:[#allocation9 + $0xa8] sm:$0xf]
    %v1699 = vld [vmem:[#allocation9 + $0xac] sm:$0xf]
    %v1700 = vld [vmem:[#allocation9 + $0xb0] sm:$0xf]
    %v1701 = vld [vmem:[#allocation9 + $0xb4] sm:$0xf]
    %v1702 = vld [vmem:[#allocation9 + $0xb8] sm:$0xf]
    %v1703 = vld [vmem:[#allocation9 + $0xbc] sm:$0xf]
    %v1704 = vld [vmem:[#allocation9 + $0xc0] sm:$0xf]
    %v1705 = vld [vmem:[#allocation9 + $0xc4] sm:$0xf]
    %v1706 = vld [vmem:[#allocation9 + $0xc8] sm:$0xf]
    %v1707 = vld [vmem:[#allocation9 + $0xcc] sm:$0xf]
    %v1708 = vld [vmem:[#allocation9 + $0xd0] sm:$0xf]
    %v1709 = vld [vmem:[#allocation9 + $0xd4] sm:$0xf]
    %v1710 = vld [vmem:[#allocation9 + $0xd8] sm:$0xf]
    %v1711 = vld [vmem:[#allocation9 + $0xdc] sm:$0xf]
    %v1712 = vld [vmem:[#allocation9 + $0xe0] sm:$0xf]
    %v1713 = vld [vmem:[#allocation9 + $0xe4] sm:$0xf]
    %v1714 = vld [vmem:[#allocation9 + $0xe8] sm:$0xf]
    %v1715 = vld [vmem:[#allocation9 + $0xec] sm:$0xf]
    %v1716 = vld [vmem:[#allocation9 + $0xf0] sm:$0xf]
    %v1717 = vld [vmem:[#allocation9 + $0xf4] sm:$0xf]
    %v1718 = vld [vmem:[#allocation9 + $0xf8] sm:$0xf]
    %v1719 = vld [vmem:[#allocation9 + $0xfc] sm:$0xf]
    %v1784 = vunpack.c.l.b16 %v1656
    %v1785 = vunpack.c.l.b16 %v1657
    %v1786 = vunpack.c.l.b16 %v1658
    %v1787 = vunpack.c.l.b16 %v1659
    %v1788 = vunpack.c.l.b16 %v1660
    %v1789 = vunpack.c.l.b16 %v1661
    %v1790 = vunpack.c.l.b16 %v1662
    %v1791 = vunpack.c.l.b16 %v1663
    %v1792 = vunpack.c.l.b16 %v1664
    %v1793 = vunpack.c.l.b16 %v1665
    %v1794 = vunpack.c.l.b16 %v1666
    %v1795 = vunpack.c.l.b16 %v1667
    %v1796 = vunpack.c.l.b16 %v1668
    %v1797 = vunpack.c.l.b16 %v1669
    %v1798 = vunpack.c.l.b16 %v1670
    %v1799 = vunpack.c.l.b16 %v1671
    %v1800 = vunpack.c.l.b16 %v1672
    %v1801 = vunpack.c.l.b16 %v1673
    %v1802 = vunpack.c.l.b16 %v1674
    %v1803 = vunpack.c.l.b16 %v1675
    %v1804 = vunpack.c.l.b16 %v1676
    %v1805 = vunpack.c.l.b16 %v1677
    %v1806 = vunpack.c.l.b16 %v1678
    %v1807 = vunpack.c.l.b16 %v1679
    %v1808 = vunpack.c.l.b16 %v1680
    %v1809 = vunpack.c.l.b16 %v1681
    %v1810 = vunpack.c.l.b16 %v1682
    %v1811 = vunpack.c.l.b16 %v1683
    %v1812 = vunpack.c.l.b16 %v1684
    %v1813 = vunpack.c.l.b16 %v1685
    %v1814 = vunpack.c.l.b16 %v1686
    %v1815 = vunpack.c.l.b16 %v1687
    %v1816 = vunpack.c.l.b16 %v1688
    %v1817 = vunpack.c.l.b16 %v1689
    %v1818 = vunpack.c.l.b16 %v1690
    %v1819 = vunpack.c.l.b16 %v1691
    %v1820 = vunpack.c.l.b16 %v1692
    %v1821 = vunpack.c.l.b16 %v1693
    %v1822 = vunpack.c.l.b16 %v1694
    %v1823 = vunpack.c.l.b16 %v1695
    %v1824 = vunpack.c.l.b16 %v1696
    %v1825 = vunpack.c.l.b16 %v1697
    %v1826 = vunpack.c.l.b16 %v1698
    %v1827 = vunpack.c.l.b16 %v1699
    %v1828 = vunpack.c.l.b16 %v1700
    %v1829 = vunpack.c.l.b16 %v1701
    %v1830 = vunpack.c.l.b16 %v1702
    %v1831 = vunpack.c.l.b16 %v1703
    %v1832 = vunpack.c.l.b16 %v1704
    %v1833 = vunpack.c.l.b16 %v1705
    %v1834 = vunpack.c.l.b16 %v1706
    %v1835 = vunpack.c.l.b16 %v1707
    %v1836 = vunpack.c.l.b16 %v1708
    %v1837 = vunpack.c.l.b16 %v1709
    %v1838 = vunpack.c.l.b16 %v1710
    %v1839 = vunpack.c.l.b16 %v1711
    %v1840 = vunpack.c.l.b16 %v1712
    %v1841 = vunpack.c.l.b16 %v1713
    %v1842 = vunpack.c.l.b16 %v1714
    %v1843 = vunpack.c.l.b16 %v1715
    %v1844 = vunpack.c.l.b16 %v1716
    %v1845 = vunpack.c.l.b16 %v1717
    %v1846 = vunpack.c.l.b16 %v1718
    %v1847 = vunpack.c.l.b16 %v1719
    %v1848 = vpack.c.b16 %v1785, %v1784
    %v1849 = vpack.c.b16 %v1787, %v1786
    %v1850 = vpack.c.b16 %v1789, %v1788
    %v1851 = vpack.c.b16 %v1791, %v1790
    %v1852 = vpack.c.b16 %v1793, %v1792
    %v1853 = vpack.c.b16 %v1795, %v1794
    %v1854 = vpack.c.b16 %v1797, %v1796
    %v1855 = vpack.c.b16 %v1799, %v1798
    %v1856 = vpack.c.b16 %v1801, %v1800
    %v1857 = vpack.c.b16 %v1803, %v1802
    %v1858 = vpack.c.b16 %v1805, %v1804
    %v1859 = vpack.c.b16 %v1807, %v1806
    %v1860 = vpack.c.b16 %v1809, %v1808
    %v1861 = vpack.c.b16 %v1811, %v1810
    %v1862 = vpack.c.b16 %v1813, %v1812
    %v1863 = vpack.c.b16 %v1815, %v1814
    %v1864 = vpack.c.b16 %v1817, %v1816
    %v1865 = vpack.c.b16 %v1819, %v1818
    %v1866 = vpack.c.b16 %v1821, %v1820
    %v1867 = vpack.c.b16 %v1823, %v1822
    %v1868 = vpack.c.b16 %v1825, %v1824
    %v1869 = vpack.c.b16 %v1827, %v1826
    %v1870 = vpack.c.b16 %v1829, %v1828
    %v1871 = vpack.c.b16 %v1831, %v1830
    %v1872 = vpack.c.b16 %v1833, %v1832
    %v1873 = vpack.c.b16 %v1835, %v1834
    %v1874 = vpack.c.b16 %v1837, %v1836
    %v1875 = vpack.c.b16 %v1839, %v1838
    %v1876 = vpack.c.b16 %v1841, %v1840
    %v1877 = vpack.c.b16 %v1843, %v1842
    %v1878 = vpack.c.b16 %v1845, %v1844
    %v1879 = vpack.c.b16 %v1847, %v1846
    %1912 = vmatprep.subr.bf16.mxu0 0
    %1913 = vmatpush1.bf16.msra.mxu0 %v1855
    %1914 = vmatprep.subr.bf16.mxu0 0
    %1915 = vmatpush1.bf16.msra.mxu0 %v1854
    %1916 = vmatprep.subr.bf16.mxu0 0
    %1917 = vmatpush1.bf16.msra.mxu0 %v1853
    %1918 = vmatprep.subr.bf16.mxu0 0
    %1919 = vmatpush1.bf16.msra.mxu0 %v1852
    %1920 = vmatprep.subr.bf16.mxu0 0
    %1921 = vmatpush1.bf16.msra.mxu0 %v1851
    %1922 = vmatprep.subr.bf16.mxu0 0
    %1923 = vmatpush1.bf16.msra.mxu0 %v1850
    %1924 = vmatprep.subr.bf16.mxu0 0
    %1925 = vmatpush1.bf16.msra.mxu0 %v1849
    %1926 = vmatprep.subr.bf16.mxu0 0
    %1927 = vmatpush1.bf16.msra.mxu0 %v1848
    %1928 = vmatprep.subr.bf16.mxu0 0
    %1929 = vmatpush2.bf16.msra.mxu0 %v1863
    %1930 = vmatprep.subr.bf16.mxu0 0
    %1931 = vmatpush2.bf16.msra.mxu0 %v1862
    %1932 = vmatprep.subr.bf16.mxu0 0
    %1933 = vmatpush2.bf16.msra.mxu0 %v1861
    %1934 = vmatprep.subr.bf16.mxu0 0
    %1935 = vmatpush2.bf16.msra.mxu0 %v1860
    %1936 = vmatprep.subr.bf16.mxu0 0
    %1937 = vmatpush2.bf16.msra.mxu0 %v1859
    %1938 = vmatprep.subr.bf16.mxu0 0
    %1939 = vmatpush2.bf16.msra.mxu0 %v1858
    %1940 = vmatprep.subr.bf16.mxu0 0
    %1941 = vmatpush2.bf16.msra.mxu0 %v1857
    %1942 = vmatprep.subr.bf16.mxu0 0
    %1943 = vmatpush2.bf16.msra.mxu0 %v1856
    %1944 = vmatprep.mubr.bf16.mxu0 %v1653
    %1945 = vmatmul.mubr.bf16.gmra.mxu0 %v1652
    %v1946 = vpop.f32.mrf.mxu0
    %v1947 = vadd.f32 0.0, %v1946
    %v1948 = vpop.f32.mrf.mxu0
    %v1949 = vpop.f32.mrf.mxu0
    %v1950 = vpop.f32.mrf.mxu0
    %1951 = vdwg.mxu0
    %1952 = vmatprep.subr.bf16.mxu0 0
    %1953 = vmatpush1.bf16.msra.mxu0 %v1871
    %1954 = vmatprep.subr.bf16.mxu0 0
    %1955 = vmatpush1.bf16.msra.mxu0 %v1870
    %1956 = vmatprep.subr.bf16.mxu0 0
    %1957 = vmatpush1.bf16.msra.mxu0 %v1869
    %1958 = vmatprep.subr.bf16.mxu0 0
    %1959 = vmatpush1.bf16.msra.mxu0 %v1868
    %1960 = vmatprep.subr.bf16.mxu0 0
    %1961 = vmatpush1.bf16.msra.mxu0 %v1867
    %1962 = vmatprep.subr.bf16.mxu0 0
    %1963 = vmatpush1.bf16.msra.mxu0 %v1866
    %1964 = vmatprep.subr.bf16.mxu0 0
    %1965 = vmatpush1.bf16.msra.mxu0 %v1865
    %1966 = vmatprep.subr.bf16.mxu0 0
    %1967 = vmatpush1.bf16.msra.mxu0 %v1864
    %1968 = vmatprep.subr.bf16.mxu0 0
    %1969 = vmatpush2.bf16.msra.mxu0 %v1879
    %1970 = vmatprep.subr.bf16.mxu0 0
    %1971 = vmatpush2.bf16.msra.mxu0 %v1878
    %1972 = vmatprep.subr.bf16.mxu0 0
    %1973 = vmatpush2.bf16.msra.mxu0 %v1877
    %1974 = vmatprep.subr.bf16.mxu0 0
    %1975 = vmatpush2.bf16.msra.mxu0 %v1876
    %1976 = vmatprep.subr.bf16.mxu0 0
    %1977 = vmatpush2.bf16.msra.mxu0 %v1875
    %1978 = vmatprep.subr.bf16.mxu0 0
    %1979 = vmatpush2.bf16.msra.mxu0 %v1874
    %1980 = vmatprep.subr.bf16.mxu0 0
    %1981 = vmatpush2.bf16.msra.mxu0 %v1873
    %1982 = vmatprep.subr.bf16.mxu0 0
    %1983 = vmatpush2.bf16.msra.mxu0 %v1872
    %1984 = vmatprep.mubr.bf16.mxu0 %v1655
    %1985 = vmatmul.mubr.bf16.gmra.mxu0 %v1654
    %v1986 = vpop.f32.mrf.mxu0
    %v1987 = vadd.f32 %v1947, %v1986
    %v1988 = vpop.f32.mrf.mxu0
    %v1989 = vpop.f32.mrf.mxu0
    %v1990 = vpop.f32.mrf.mxu0
    %1991 = vdwg.mxu0
    %v1992 = vadd.f32 %v1294, %v1987
    %v1993 = vld [vmem:[%s3 + $0xa] sm:$0x1]
    %v1994 = vlaneseq
    %v1995 = vshrl.u32 %v1994, 7
    %v1996 = vsub.s32 0, %v1995
    %v1997 = vrot.slane %v1993, %v1996
    %v1998 = vadd.f32 %v1992, %v1997
    %v1999 = vld [vmem:[%s3 + $0xb] sm:$0x1]
    %v2000 = vld [vmem:[%s3 + $0xc] sm:$0x1]
    %2001 = vadd.xlane.f32.xlu0 %v1998
    %v2002 = vpop.xlane.xlu0 %2001
    %v2003 = vmul.f32 %v2002, %v622
    %v2004 = vsub.f32 %v1998, %v2003
    %v2005 = vmul.f32 %v2004, %v2004
    %2006 = vadd.xlane.f32.xlu0 %v2005
    %v2007 = vpop.xlane.xlu0 %2006
    %v2008 = vmul.f32 %v2007, %v622
    %v2009 = vadd.f32 %v2008, 1e-05
    %v2010 = vrsqrt.pop %v2009
    %v2011 = vmul.f32 %v2004, %v2010
    %v2012 = vlaneseq
    %v2013 = vshrl.u32 %v2012, 7
    %v2014 = vsub.s32 0, %v2013
    %v2015 = vrot.slane %v1999, %v2014
    %v2016 = vmul.f32 %v2011, %v2015
    %v2017 = vlaneseq
    %v2018 = vshrl.u32 %v2017, 7
    %v2019 = vsub.s32 0, %v2018
    %v2020 = vrot.slane %v2000, %v2019
    %v2021 = vadd.f32 %v2016, %v2020
    %v2022 = vpack.c.bf16 %v2021, %v2021
    %v2023 = vld [vmem:[#allocation8 + $0x20] sm:$0xf]
    %v2024 = vld [vmem:[#allocation8 + $0x44] sm:$0xf]
    %v2025 = vld [vmem:[#allocation8 + $0x68] sm:$0xf]
    %v2026 = vld [vmem:[#allocation8 + $0x8c] sm:$0xf]
    %v2027 = vld [vmem:[#allocation8 + $0xb0] sm:$0xf]
    %v2028 = vld [vmem:[#allocation8 + $0xd4] sm:$0xf]
    %v2029 = vld [vmem:[#allocation8 + $0xf8] sm:$0xf]
    %v2030 = vld [vmem:[#allocation8 + $0x11c] sm:$0xf]
    %v2031 = vld [vmem:[#allocation8 + $0x140] sm:$0xf]
    %v2032 = vld [vmem:[#allocation8 + $0x164] sm:$0xf]
    %v2033 = vld [vmem:[#allocation8 + $0x188] sm:$0xf]
    %v2034 = vld [vmem:[#allocation8 + $0x1ac] sm:$0xf]
    %v2035 = vld [vmem:[#allocation8 + $0x1d0] sm:$0xf]
    %v2036 = vld [vmem:[#allocation8 + $0x1f4] sm:$0xf]
    %v2037 = vld [vmem:[#allocation8 + $0x218] sm:$0xf]
    %v2038 = vld [vmem:[#allocation8 + $0x23c] sm:$0xf]
    %v2039 = vld [vmem:[%s3 + $0xd] sm:$0x1]
    %v2040 = vlaneseq
    %v2041 = vshrl.u32 %v2040, 7
    %v2042 = vsub.s32 0, %v2041
    %v2043 = vrot.slane %v2039, %v2042
    %v2060 = vunpack.c.l.b16 %v2023
    %v2061 = vunpack.c.l.b16 %v2024
    %v2062 = vunpack.c.l.b16 %v2025
    %v2063 = vunpack.c.l.b16 %v2026
    %v2064 = vunpack.c.l.b16 %v2027
    %v2065 = vunpack.c.l.b16 %v2028
    %v2066 = vunpack.c.l.b16 %v2029
    %v2067 = vunpack.c.l.b16 %v2030
    %v2068 = vunpack.c.l.b16 %v2031
    %v2069 = vunpack.c.l.b16 %v2032
    %v2070 = vunpack.c.l.b16 %v2033
    %v2071 = vunpack.c.l.b16 %v2034
    %v2072 = vunpack.c.l.b16 %v2035
    %v2073 = vunpack.c.l.b16 %v2036
    %v2074 = vunpack.c.l.b16 %v2037
    %v2075 = vunpack.c.l.b16 %v2038
    %v2076 = vpack.c.b16 %v2061, %v2060
    %v2077 = vpack.c.b16 %v2063, %v2062
    %v2078 = vpack.c.b16 %v2065, %v2064
    %v2079 = vpack.c.b16 %v2067, %v2066
    %v2080 = vpack.c.b16 %v2069, %v2068
    %v2081 = vpack.c.b16 %v2071, %v2070
    %v2082 = vpack.c.b16 %v2073, %v2072
    %v2083 = vpack.c.b16 %v2075, %v2074
    %2092 = vmatprep.subr.bf16.mxu0 0
    %2093 = vmatpush1.bf16.msra.mxu0 %v2083
    %2094 = vmatprep.subr.bf16.mxu0 0
    %2095 = vmatpush1.bf16.msra.mxu0 %v2082
    %2096 = vmatprep.subr.bf16.mxu0 0
    %2097 = vmatpush1.bf16.msra.mxu0 %v2081
    %2098 = vmatprep.subr.bf16.mxu0 0
    %2099 = vmatpush1.bf16.msra.mxu0 %v2080
    %2100 = vmatprep.subr.bf16.mxu0 0
    %2101 = vmatpush1.bf16.msra.mxu0 %v2079
    %2102 = vmatprep.subr.bf16.mxu0 0
    %2103 = vmatpush1.bf16.msra.mxu0 %v2078
    %2104 = vmatprep.subr.bf16.mxu0 0
    %2105 = vmatpush1.bf16.msra.mxu0 %v2077
    %2106 = vmatprep.subr.bf16.mxu0 0
    %2107 = vmatpush1.bf16.msra.mxu0 %v2076
    %2108 = vmatprep.subr.bf16.mxu0 0
    %2109 = vmatpush2.bf16.msra.mxu0 0
    %2110 = vmatprep.subr.bf16.mxu0 0
    %2111 = vmatpush2.bf16.msra.mxu0 0
    %2112 = vmatprep.subr.bf16.mxu0 0
    %2113 = vmatpush2.bf16.msra.mxu0 0
    %2114 = vmatprep.subr.bf16.mxu0 0
    %2115 = vmatpush2.bf16.msra.mxu0 0
    %2116 = vmatprep.subr.bf16.mxu0 0
    %2117 = vmatpush2.bf16.msra.mxu0 0
    %2118 = vmatprep.subr.bf16.mxu0 0
    %2119 = vmatpush2.bf16.msra.mxu0 0
    %2120 = vmatprep.subr.bf16.mxu0 0
    %2121 = vmatpush2.bf16.msra.mxu0 0
    %2122 = vmatprep.subr.bf16.mxu0 0
    %2123 = vmatpush2.bf16.msra.mxu0 0
    %2124 = vmatprep.mubr.bf16.mxu0 0
    %2125 = vmatmul.mubr.bf16.gmra.mxu0 %v2022
    %v2126 = vpop.f32.mrf.mxu0
    %v2127 = vadd.f32 %v2043, %v2126
    %v2128 = vpop.f32.mrf.mxu0
    %v2129 = vpop.f32.mrf.mxu0
    %v2130 = vpop.f32.mrf.mxu0
    %2131 = vdwg.mxu0
    %2132 = vst [vmem:[%s8] sm:$0xff] %v2127
    // Predicated region
    $region54: #{offline_rl_policy_forward.1} parent=1 // pred_check
      _
    $region55: #{offline_rl_policy_forward.1} parent=1 // pred_check_branch
      %2134 = sbr.rel (0) target = $region57
    $region56: #{offline_rl_policy_forward.1} parent=1 // pred_region
      _
    $region57: #{offline_rl_policy_forward.1} parent=1 // pred_fallthru
      _
    // Predicated region
    $region58: #{offline_rl_policy_forward.1} parent=1 // pred_check
      _
    $region59: #{offline_rl_policy_forward.1} parent=1 // pred_check_branch
      %2136 = sbr.rel (0) target = $region61
    $region60: #{offline_rl_policy_forward.1} parent=1 // pred_region
      _
    $region61: #{offline_rl_policy_forward.1} parent=1 // pred_fallthru
      _
    %2137 = vsyncpa [#allocation3], 1
    %2138 = vsyncpa [#allocation7], 1
    %2139 = vsyncpa [#allocation10], 1
    %2140 = vsyncpa [#allocation4], 1

</llo_original>
